<compile_context>
chip_gen: v7x
topology: tpu7x:2x2x1
jax: 0.10.0
libtpu: 0.0.40
codegen_flags: <defaults>
</compile_context>

<pallas_src>
import jax
import jax.numpy as jnp
from jax.experimental import pallas as pl
from jax.experimental.pallas import tpu as pltpu

FOV = 5
FEAT = 4 * FOV * FOV  # 100
NEG_SLOPE = 0.01      # torch LeakyReLU default


# -----------------------------------------------------------------------------
# Pallas kernel: normalize + MLP + denormalize on a (FEAT, TM) tile of patches
# (patches on lanes, features/hidden units on sublanes -> lane-dense I/O).
# -----------------------------------------------------------------------------
def _bayer_mlp_kernel(x_ref,
                      w1_ref, b1_ref, w2_ref, b2_ref, w3_ref, b3_ref,
                      w4_ref, b4_ref, w5_ref, b5_ref,
                      o_ref):
    x = x_ref[...].astype(jnp.float32)                      # (FEAT, TM)

    # --- normalize (algebraically simplified) ---
    # mean over the feature axis of log(x+1); then
    #   exp(log(x+1) - mean) - 1  ==  (x+1)*exp(-mean) - 1
    mean_f = jnp.mean(jnp.log(x + 1.0), axis=0, keepdims=True)   # (1, TM)
    inv_em = jnp.exp(-mean_f)                                    # (1, TM)
    em = jnp.exp(mean_f)                                         # (1, TM)
    h = (x + 1.0) * inv_em - 1.0                                 # (FEAT, TM) f32

    def linear(wt_ref, v, b_ref):
        # bf16 MXU operands, f32 accumulation; bias add in f32.
        return jnp.dot(wt_ref[...], v.astype(jnp.bfloat16),
                       preferred_element_type=jnp.float32) + b_ref[...]

    def lrelu(v):
        return jnp.maximum(v, NEG_SLOPE * v)

    h = lrelu(linear(w1_ref, h, b1_ref))   # (128, TM)
    h = lrelu(linear(w2_ref, h, b2_ref))   # (64, TM)
    h = lrelu(linear(w3_ref, h, b3_ref))   # (64, TM)
    h = lrelu(linear(w4_ref, h, b4_ref))   # (32, TM)
    z = linear(w5_ref, h, b5_ref)          # (12, TM)

    # --- denormalize (algebraically simplified) ---
    #   exp(log(clamp(z,-0.5)+1) + mean) - 1  ==  (clamp(z,-0.5)+1)*exp(mean) - 1
    o_ref[...] = ((jnp.maximum(z, -0.5) + 1.0) * em - 1.0).astype(o_ref.dtype)


def _choose_tm(n, tm_max=2048, min_grid=8):
    """Pick a lane-dense (multiple-of-128) row tile; keep >= min_grid steps."""
    t = pl.cdiv(n, min_grid)
    t = pl.cdiv(t, 128) * 128
    return int(max(128, min(tm_max, t)))


def _mlp_pallas(in_f_t, params):
    """in_f_t: (FEAT, N) -> (12, N) float32 via the Pallas kernel."""
    F, N = in_f_t.shape
    assert F == FEAT
    tm = _choose_tm(N)
    n_pad = pl.cdiv(N, tm) * tm
    # Padded columns are all-zero patches: they flow harmlessly through the
    # log/exp/MLP math and are sliced off afterwards.
    x = jnp.pad(in_f_t.astype(jnp.bfloat16), ((0, 0), (0, n_pad - N)))

    weight_args = []
    in_specs = [pl.BlockSpec((F, tm), lambda i: (0, i))]
    for w, b in zip(params[0::2], params[1::2]):
        wt = w.T.astype(jnp.bfloat16)                  # (fout, fin) bf16
        bt = b.reshape(-1, 1).astype(jnp.float32)      # (fout, 1)   f32
        weight_args += [wt, bt]
        in_specs += [pl.BlockSpec(wt.shape, lambda i: (0, 0)),
                     pl.BlockSpec(bt.shape, lambda i: (0, 0))]

    out = pl.pallas_call(
        _bayer_mlp_kernel,
        out_shape=jax.ShapeDtypeStruct((12, n_pad), jnp.float32),
        grid_spec=pltpu.PrefetchScalarGridSpec(
            num_scalar_prefetch=0,
            grid=(n_pad // tm,),
            in_specs=in_specs,
            out_specs=pl.BlockSpec((12, tm), lambda i: (0, i)),
        ),
        compiler_params=pltpu.CompilerParams(
            dimension_semantics=("parallel",),
            vmem_limit_bytes=32 * 1024 * 1024),
    )(x, *weight_args)
    return out[:, :N]


# -----------------------------------------------------------------------------
# Glue: patch extraction (torch unfold semantics) and pixel re-assembly
# -----------------------------------------------------------------------------
def _extract_features(mosaic, fov=FOV):
    """mosaic: (bs, C, H, W) -> in_f_T: (4*fov*fov, bs*h*w) bf16, plus dims."""
    bs, _, H, W = mosaic.shape
    gray = jnp.sum(mosaic, axis=1)                       # (bs, H, W)

    # color[b, c, i, j] = gray[b, 2i+wH, 2j+wW], c = 2*wW + wH
    g = gray.reshape(bs, H // 2, 2, W // 2, 2)           # (b, i, wH, j, wW)
    color = jnp.transpose(g, (0, 4, 2, 1, 3))            # (b, wW, wH, i, j)
    h2, w2 = H // 2, W // 2
    color = color.reshape(bs, 4, h2, w2).astype(jnp.bfloat16)   # (b, c, i, j)

    hp, wp = h2 - fov + 1, w2 - fov + 1
    cols = []
    for fw in range(fov):
        rows = []
        for fh in range(fov):
            rows.append(color[:, :, fh:fh + hp, fw:fw + wp])
        cols.append(jnp.stack(rows, axis=-1))            # (b, 4, hp, wp, fh)
    patches = jnp.stack(cols, axis=-2)                   # (b, 4, hp, wp, fw, fh)

    # feature order c, fw, fh (matches torch permute/view); patches on columns
    patches = jnp.transpose(patches, (1, 4, 5, 0, 2, 3))  # (c, fw, fh, b, i, j)
    in_f_t = patches.reshape(4 * fov * fov, bs * hp * wp)
    return in_f_t, (bs, hp, wp)


def _assemble_output(out_f, dims):
    """out_f: (N, 12) -> (bs, 3, 2*hp, 2*wp)."""
    bs, hp, wp = dims
    out = out_f.reshape(bs, hp, wp, 3, 2, 2)
    out = jnp.transpose(out, (0, 3, 1, 4, 2, 5))         # (b, 3, hp, 2, wp, 2)
    return out.reshape(bs, 3, hp * 2, wp * 2)


def bayer_nn_forward(mosaic, params):
    in_f_t, dims = _extract_features(mosaic)
    out_f_t = _mlp_pallas(in_f_t, params)                # (12, N)
    return _assemble_output(out_f_t.T, dims)


# -----------------------------------------------------------------------------
# Deterministic parameter init (synthetic; layout (in, out) for x @ W + b)
# -----------------------------------------------------------------------------
def init_params(key):
    sizes = [(FEAT, 128), (128, 64), (64, 64), (64, 32), (32, 12)]
    params = []
    for (fin, fout) in sizes:
        key, kw, kb = jax.random.split(key, 3)
        scale = 1.0 / jnp.sqrt(jnp.float32(fin))
        w = jax.random.uniform(kw, (fin, fout), jnp.float32, -scale, scale)
        b = jax.random.uniform(kb, (fout,), jnp.float32, -scale, scale)
        params += [w, b]
    return tuple(params)


# -----------------------------------------------------------------------------
# Pure-JAX f32 reference (original PyTorch math form) for a correctness check
# -----------------------------------------------------------------------------
def _reference(mosaic, params):
    in_f_t, dims = _extract_features(mosaic)
    in_f = in_f_t.T.astype(jnp.float32)                  # (N, FEAT)
    (w1, b1, w2, b2, w3, b3, w4, b4, w5, b5) = params

    logx = jnp.log(in_f + 1.0)
    mean_f = jnp.mean(logx, axis=1, keepdims=True)
    h = jnp.exp(logx - mean_f) - 1.0

    def lrelu(v):
        return jnp.where(v >= 0.0, v, NEG_SLOPE * v)

    h = lrelu(h @ w1 + b1)
    h = lrelu(h @ w2 + b2)
    h = lrelu(h @ w3 + b3)
    h = lrelu(h @ w4 + b4)
    out = h @ w5 + b5
    out = jnp.exp(jnp.log(jnp.maximum(out, -0.5) + 1.0) + mean_f) - 1.0
    return _assemble_output(out, dims)


if __name__ == "__main__":
    key = jax.random.PRNGKey(0)
    kp, kx = jax.random.split(key)
    params = init_params(kp)

    # mosaic: NCHW, bs=2, C=3, H=W=32 -> 16x16 quad grid -> 12x12 patches
    mosaic = jax.random.uniform(kx, (2, 3, 32, 32), jnp.float32)

    fwd = jax.jit(bayer_nn_forward)
    out = jax.block_until_ready(fwd(mosaic, params))
    assert out.shape == (2, 3, 24, 24), out.shape

    ref = jax.block_until_ready(_reference(mosaic, params))
    # Tolerance reflects bf16 MXU operands / bf16 feature feed (f32 accumulate);
    # semantic errors (wrong layout, wrong normalization) would be O(1).
    assert jnp.allclose(out, ref, rtol=5e-2, atol=1e-1), float(
        jnp.max(jnp.abs(out - ref)))

    print("KERNEL_OK")
</pallas_src>

<mosaic_0001>
module attributes {stable_mosaic.version = 11 : i64} {
  func.func @_bayer_mlp_kernel(%arg0: i32, %arg1: memref<100x128xbf16, #tpu.memory_space<vmem>>, %arg2: memref<128x100xbf16, #tpu.memory_space<vmem>>, %arg3: memref<128x1xf32, #tpu.memory_space<vmem>>, %arg4: memref<64x128xbf16, #tpu.memory_space<vmem>>, %arg5: memref<64x1xf32, #tpu.memory_space<vmem>>, %arg6: memref<64x64xbf16, #tpu.memory_space<vmem>>, %arg7: memref<64x1xf32, #tpu.memory_space<vmem>>, %arg8: memref<32x64xbf16, #tpu.memory_space<vmem>>, %arg9: memref<32x1xf32, #tpu.memory_space<vmem>>, %arg10: memref<12x32xbf16, #tpu.memory_space<vmem>>, %arg11: memref<12x1xf32, #tpu.memory_space<vmem>>, %arg12: memref<12x128xf32, #tpu.memory_space<vmem>>) attributes {dimension_semantics = [#tpu.dimension_semantics<parallel>], iteration_bounds = array<i64: 3>, scalar_prefetch = 0 : i64, scratch_operands = 0 : i64, tpu.core_type = #tpu.core_type<tc>, window_params = [{transform_indices = @transform_0, window_bounds = array<i64: 100, 128>}, {pipeline_mode = #tpu.pipeline_mode<synchronous>, transform_indices = @transform_1, window_bounds = array<i64: 128, 100>}, {pipeline_mode = #tpu.pipeline_mode<synchronous>, transform_indices = @transform_2, window_bounds = array<i64: 128, 1>}, {pipeline_mode = #tpu.pipeline_mode<synchronous>, transform_indices = @transform_3, window_bounds = array<i64: 64, 128>}, {pipeline_mode = #tpu.pipeline_mode<synchronous>, transform_indices = @transform_4, window_bounds = array<i64: 64, 1>}, {pipeline_mode = #tpu.pipeline_mode<synchronous>, transform_indices = @transform_5, window_bounds = array<i64: 64, 64>}, {pipeline_mode = #tpu.pipeline_mode<synchronous>, transform_indices = @transform_6, window_bounds = array<i64: 64, 1>}, {pipeline_mode = #tpu.pipeline_mode<synchronous>, transform_indices = @transform_7, window_bounds = array<i64: 32, 64>}, {pipeline_mode = #tpu.pipeline_mode<synchronous>, transform_indices = @transform_8, window_bounds = array<i64: 32, 1>}, {pipeline_mode = #tpu.pipeline_mode<synchronous>, transform_indices = @transform_9, window_bounds = array<i64: 12, 32>}, {pipeline_mode = #tpu.pipeline_mode<synchronous>, transform_indices = @transform_10, window_bounds = array<i64: 12, 1>}, {transform_indices = @transform_11, window_bounds = array<i64: 12, 128>}]} {
    %c0 = arith.constant 0 : index
    %c0_0 = arith.constant 0 : index
    %0 = vector.load %arg1[%c0, %c0_0] : memref<100x128xbf16, #tpu.memory_space<vmem>>, vector<100x128xbf16>
    %1 = arith.extf %0 : vector<100x128xbf16> to vector<100x128xf32>
    %cst = arith.constant 1.000000e+00 : f32
    %2 = vector.broadcast %cst : f32 to vector<100x128xf32>
    %3 = arith.addf %1, %2 : vector<100x128xf32>
    %4 = math.log %3 : vector<100x128xf32>
    %cst_1 = arith.constant dense<0.000000e+00> : vector<128xf32>
    %5 = vector.multi_reduction <add>, %4, %cst_1 [0] : vector<100x128xf32> to vector<128xf32>
    %6 = vector.shape_cast %5 : vector<128xf32> to vector<1x128xf32>
    %cst_2 = arith.constant 1.000000e+02 : f32
    %7 = vector.broadcast %cst_2 : f32 to vector<1x128xf32>
    %8 = arith.divf %6, %7 : vector<1x128xf32>
    %cst_3 = arith.constant 0.000000e+00 : f32
    %9 = vector.broadcast %cst_3 : f32 to vector<1x128xf32>
    %10 = arith.subf %9, %8 : vector<1x128xf32>
    %11 = math.exp %10 : vector<1x128xf32>
    %12 = math.exp %8 : vector<1x128xf32>
    %cst_4 = arith.constant 1.000000e+00 : f32
    %13 = vector.broadcast %cst_4 : f32 to vector<100x128xf32>
    %14 = arith.addf %1, %13 : vector<100x128xf32>
    %15 = vector.broadcast %11 : vector<1x128xf32> to vector<100x128xf32>
    %16 = arith.mulf %14, %15 : vector<100x128xf32>
    %cst_5 = arith.constant 1.000000e+00 : f32
    %17 = vector.broadcast %cst_5 : f32 to vector<100x128xf32>
    %18 = arith.subf %16, %17 : vector<100x128xf32>
    %c0_6 = arith.constant 0 : index
    %c0_7 = arith.constant 0 : index
    %19 = vector.load %arg2[%c0_6, %c0_7] : memref<128x100xbf16, #tpu.memory_space<vmem>>, vector<128x100xbf16>
    %20 = arith.truncf %18 : vector<100x128xf32> to vector<100x128xbf16>
    %cst_8 = arith.constant dense<0.000000e+00> : vector<128x128xf32>
    %21 = tpu.matmul %19, %20, %cst_8 {dimension_numbers = #tpu.dot_dimension_numbers<[1], [0], [0], [1], [0, 0, 1, 1], [], []>} : vector<128x100xbf16>, vector<100x128xbf16>, vector<128x128xf32> -> vector<128x128xf32>
    %c0_9 = arith.constant 0 : index
    %c0_10 = arith.constant 0 : index
    %22 = vector.load %arg3[%c0_9, %c0_10] : memref<128x1xf32, #tpu.memory_space<vmem>>, vector<128x1xf32>
    %23 = vector.broadcast %22 : vector<128x1xf32> to vector<128x128xf32>
    %24 = arith.addf %21, %23 : vector<128x128xf32>
    %cst_11 = arith.constant 0.00999999977 : f32
    %25 = vector.broadcast %cst_11 : f32 to vector<128x128xf32>
    %26 = arith.mulf %25, %24 : vector<128x128xf32>
    %27 = arith.maximumf %24, %26 : vector<128x128xf32>
    %c0_12 = arith.constant 0 : index
    %c0_13 = arith.constant 0 : index
    %28 = vector.load %arg4[%c0_12, %c0_13] : memref<64x128xbf16, #tpu.memory_space<vmem>>, vector<64x128xbf16>
    %29 = arith.truncf %27 : vector<128x128xf32> to vector<128x128xbf16>
    %cst_14 = arith.constant dense<0.000000e+00> : vector<64x128xf32>
    %30 = tpu.matmul %28, %29, %cst_14 {dimension_numbers = #tpu.dot_dimension_numbers<[1], [0], [0], [1], [0, 0, 1, 1], [], []>} : vector<64x128xbf16>, vector<128x128xbf16>, vector<64x128xf32> -> vector<64x128xf32>
    %c0_15 = arith.constant 0 : index
    %c0_16 = arith.constant 0 : index
    %31 = vector.load %arg5[%c0_15, %c0_16] : memref<64x1xf32, #tpu.memory_space<vmem>>, vector<64x1xf32>
    %32 = vector.broadcast %31 : vector<64x1xf32> to vector<64x128xf32>
    %33 = arith.addf %30, %32 : vector<64x128xf32>
    %cst_17 = arith.constant 0.00999999977 : f32
    %34 = vector.broadcast %cst_17 : f32 to vector<64x128xf32>
    %35 = arith.mulf %34, %33 : vector<64x128xf32>
    %36 = arith.maximumf %33, %35 : vector<64x128xf32>
    %c0_18 = arith.constant 0 : index
    %c0_19 = arith.constant 0 : index
    %37 = vector.load %arg6[%c0_18, %c0_19] : memref<64x64xbf16, #tpu.memory_space<vmem>>, vector<64x64xbf16>
    %38 = arith.truncf %36 : vector<64x128xf32> to vector<64x128xbf16>
    %cst_20 = arith.constant dense<0.000000e+00> : vector<64x128xf32>
    %39 = tpu.matmul %37, %38, %cst_20 {dimension_numbers = #tpu.dot_dimension_numbers<[1], [0], [0], [1], [0, 0, 1, 1], [], []>} : vector<64x64xbf16>, vector<64x128xbf16>, vector<64x128xf32> -> vector<64x128xf32>
    %c0_21 = arith.constant 0 : index
    %c0_22 = arith.constant 0 : index
    %40 = vector.load %arg7[%c0_21, %c0_22] : memref<64x1xf32, #tpu.memory_space<vmem>>, vector<64x1xf32>
    %41 = vector.broadcast %40 : vector<64x1xf32> to vector<64x128xf32>
    %42 = arith.addf %39, %41 : vector<64x128xf32>
    %cst_23 = arith.constant 0.00999999977 : f32
    %43 = vector.broadcast %cst_23 : f32 to vector<64x128xf32>
    %44 = arith.mulf %43, %42 : vector<64x128xf32>
    %45 = arith.maximumf %42, %44 : vector<64x128xf32>
    %c0_24 = arith.constant 0 : index
    %c0_25 = arith.constant 0 : index
    %46 = vector.load %arg8[%c0_24, %c0_25] : memref<32x64xbf16, #tpu.memory_space<vmem>>, vector<32x64xbf16>
    %47 = arith.truncf %45 : vector<64x128xf32> to vector<64x128xbf16>
    %cst_26 = arith.constant dense<0.000000e+00> : vector<32x128xf32>
    %48 = tpu.matmul %46, %47, %cst_26 {dimension_numbers = #tpu.dot_dimension_numbers<[1], [0], [0], [1], [0, 0, 1, 1], [], []>} : vector<32x64xbf16>, vector<64x128xbf16>, vector<32x128xf32> -> vector<32x128xf32>
    %c0_27 = arith.constant 0 : index
    %c0_28 = arith.constant 0 : index
    %49 = vector.load %arg9[%c0_27, %c0_28] : memref<32x1xf32, #tpu.memory_space<vmem>>, vector<32x1xf32>
    %50 = vector.broadcast %49 : vector<32x1xf32> to vector<32x128xf32>
    %51 = arith.addf %48, %50 : vector<32x128xf32>
    %cst_29 = arith.constant 0.00999999977 : f32
    %52 = vector.broadcast %cst_29 : f32 to vector<32x128xf32>
    %53 = arith.mulf %52, %51 : vector<32x128xf32>
    %54 = arith.maximumf %51, %53 : vector<32x128xf32>
    %c0_30 = arith.constant 0 : index
    %c0_31 = arith.constant 0 : index
    %55 = vector.load %arg10[%c0_30, %c0_31] : memref<12x32xbf16, #tpu.memory_space<vmem>>, vector<12x32xbf16>
    %56 = arith.truncf %54 : vector<32x128xf32> to vector<32x128xbf16>
    %cst_32 = arith.constant dense<0.000000e+00> : vector<12x128xf32>
    %57 = tpu.matmul %55, %56, %cst_32 {dimension_numbers = #tpu.dot_dimension_numbers<[1], [0], [0], [1], [0, 0, 1, 1], [], []>} : vector<12x32xbf16>, vector<32x128xbf16>, vector<12x128xf32> -> vector<12x128xf32>
    %c0_33 = arith.constant 0 : index
    %c0_34 = arith.constant 0 : index
    %58 = vector.load %arg11[%c0_33, %c0_34] : memref<12x1xf32, #tpu.memory_space<vmem>>, vector<12x1xf32>
    %59 = vector.broadcast %58 : vector<12x1xf32> to vector<12x128xf32>
    %60 = arith.addf %57, %59 : vector<12x128xf32>
    %cst_35 = arith.constant -5.000000e-01 : f32
    %61 = vector.broadcast %cst_35 : f32 to vector<12x128xf32>
    %62 = arith.maximumf %60, %61 : vector<12x128xf32>
    %cst_36 = arith.constant 1.000000e+00 : f32
    %63 = vector.broadcast %cst_36 : f32 to vector<12x128xf32>
    %64 = arith.addf %62, %63 : vector<12x128xf32>
    %65 = vector.broadcast %12 : vector<1x128xf32> to vector<12x128xf32>
    %66 = arith.mulf %64, %65 : vector<12x128xf32>
    %cst_37 = arith.constant 1.000000e+00 : f32
    %67 = vector.broadcast %cst_37 : f32 to vector<12x128xf32>
    %68 = arith.subf %66, %67 : vector<12x128xf32>
    %c0_38 = arith.constant 0 : index
    %c0_39 = arith.constant 0 : index
    %69 = vector.load %arg12[%c0_38, %c0_39] : memref<12x128xf32, #tpu.memory_space<vmem>>, vector<12x128xf32>
    tpu.vector_store %arg12[%c0_38, %c0_39], %68 {strides = array<i32>} : memref<12x128xf32, #tpu.memory_space<vmem>>, vector<12x128xf32>,
    return
  }
  func.func @transform_0(%arg0: i32) -> (i32, i32) {
    %c0_i32 = arith.constant 0 : i32
    %c0_i32_0 = arith.constant 0 : i32
    return %c0_i32, %arg0 : i32, i32
  }
  func.func @transform_1(%arg0: i32) -> (i32, i32) {
    %c0_i32 = arith.constant 0 : i32
    %c0_i32_0 = arith.constant 0 : i32
    %c0_i32_1 = arith.constant 0 : i32
    return %c0_i32, %c0_i32_0 : i32, i32
  }
  func.func @transform_2(%arg0: i32) -> (i32, i32) {
    %c0_i32 = arith.constant 0 : i32
    %c0_i32_0 = arith.constant 0 : i32
    %c0_i32_1 = arith.constant 0 : i32
    return %c0_i32, %c0_i32_0 : i32, i32
  }
  func.func @transform_3(%arg0: i32) -> (i32, i32) {
    %c0_i32 = arith.constant 0 : i32
    %c0_i32_0 = arith.constant 0 : i32
    %c0_i32_1 = arith.constant 0 : i32
    return %c0_i32, %c0_i32_0 : i32, i32
  }
  func.func @transform_4(%arg0: i32) -> (i32, i32) {
    %c0_i32 = arith.constant 0 : i32
    %c0_i32_0 = arith.constant 0 : i32
    %c0_i32_1 = arith.constant 0 : i32
    return %c0_i32, %c0_i32_0 : i32, i32
  }
  func.func @transform_5(%arg0: i32) -> (i32, i32) {
    %c0_i32 = arith.constant 0 : i32
    %c0_i32_0 = arith.constant 0 : i32
    %c0_i32_1 = arith.constant 0 : i32
    return %c0_i32, %c0_i32_0 : i32, i32
  }
  func.func @transform_6(%arg0: i32) -> (i32, i32) {
    %c0_i32 = arith.constant 0 : i32
    %c0_i32_0 = arith.constant 0 : i32
    %c0_i32_1 = arith.constant 0 : i32
    return %c0_i32, %c0_i32_0 : i32, i32
  }
  func.func @transform_7(%arg0: i32) -> (i32, i32) {
    %c0_i32 = arith.constant 0 : i32
    %c0_i32_0 = arith.constant 0 : i32
    %c0_i32_1 = arith.constant 0 : i32
    return %c0_i32, %c0_i32_0 : i32, i32
  }
  func.func @transform_8(%arg0: i32) -> (i32, i32) {
    %c0_i32 = arith.constant 0 : i32
    %c0_i32_0 = arith.constant 0 : i32
    %c0_i32_1 = arith.constant 0 : i32
    return %c0_i32, %c0_i32_0 : i32, i32
  }
  func.func @transform_9(%arg0: i32) -> (i32, i32) {
    %c0_i32 = arith.constant 0 : i32
    %c0_i32_0 = arith.constant 0 : i32
    %c0_i32_1 = arith.constant 0 : i32
    return %c0_i32, %c0_i32_0 : i32, i32
  }
  func.func @transform_10(%arg0: i32) -> (i32, i32) {
    %c0_i32 = arith.constant 0 : i32
    %c0_i32_0 = arith.constant 0 : i32
    %c0_i32_1 = arith.constant 0 : i32
    return %c0_i32, %c0_i32_0 : i32, i32
  }
  func.func @transform_11(%arg0: i32) -> (i32, i32) {
    %c0_i32 = arith.constant 0 : i32
    %c0_i32_0 = arith.constant 0 : i32
    return %c0_i32, %arg0 : i32, i32
  }
}

</mosaic_0001>

<llo_original>
// kernel: bayer_nn_forward.1
$region0: #{bayer_nn_forward.1}
  #allocation0 [shape = 'u32[]', space=smem, size = 0x4, offset = 0x4, fixed_abs, tag = 'smem constant byte address 0x4 - core index']
  #allocation1 [shape = 'u32[144,128]{1,0:T(1,128)}', space=vmem, size = 0x12000, scoped, tag = 'internal scratch']
  %s0 = inlined_call_operand.vmem [shape: bf16[100,384], index: 0, kind: input, shape index: {}]
  %s1 = inlined_call_operand.vmem [shape: bf16[128,100], index: 1, kind: input, shape index: {}]
  %s2 = inlined_call_operand.vmem [shape: f32[128,1], index: 2, kind: input, shape index: {}]
  %s3 = inlined_call_operand.vmem [shape: bf16[64,128], index: 3, kind: input, shape index: {}]
  %s4 = inlined_call_operand.vmem [shape: f32[64,1], index: 4, kind: input, shape index: {}]
  %s5 = inlined_call_operand.vmem [shape: bf16[64,64], index: 5, kind: input, shape index: {}]
  %s6 = inlined_call_operand.vmem [shape: f32[64,1], index: 6, kind: input, shape index: {}]
  %s7 = inlined_call_operand.vmem [shape: bf16[32,64], index: 7, kind: input, shape index: {}]
  %s8 = inlined_call_operand.vmem [shape: f32[32,1], index: 8, kind: input, shape index: {}]
  %s9 = inlined_call_operand.vmem [shape: bf16[12,32], index: 9, kind: input, shape index: {}]
  %s10 = inlined_call_operand.vmem [shape: f32[12,1], index: 10, kind: input, shape index: {}]
  %s11 = inlined_call_operand.vmem [shape: f32[12,384], index: 11, kind: output, shape index: {}]
  %s12 = sld [smem:[#allocation0]]
  $region152: #{bayer_nn_forward.1} parent=0
    _
  %s14 = ssub.s32 1, %s12
  %s15 = scalar_select 0, %s14, %s12
  $region1: #{bayer_nn_forward.1} parent=0
    #allocation2 [shape = 'u8[53248]{0}', space=vmem, size = 0xd000, scoped, tag = 'input window, operand 0']
    #allocation3 [shape = 'u8[16384]{0}', space=vmem, size = 0x4000, scoped, tag = 'output window, operand 0']
    loop: start=0, step=1, limit=5
    $region2: #{bayer_nn_forward.1} parent=1 // loop_pre_header
      _
    $region3: #{bayer_nn_forward.1} parent=1 // loop_header
      %s17 = sphi 0, %s21
      %p18 = scmp.ge.s32.totalorder %s17, 5
      %s27 = sphi 0, %s29
      %s30 = sphi 0, %s27
      %s31 = sphi 0, %s30
      %s47 = sphi 0, %s31
      %s51 = sphi 0, %s51
      %s53 = sphi 0, %s51
      %s54 = sphi 0, %s53
      %s68 = sphi 0, %s54
      %s72 = sphi 0, %s72
      %s74 = sphi 0, %s72
      %s75 = sphi 0, %s74
      %s89 = sphi 0, %s75
      %s93 = sphi 0, %s93
      %s95 = sphi 0, %s93
      %s96 = sphi 0, %s95
      %s110 = sphi 0, %s96
      %s114 = sphi 0, %s114
      %s116 = sphi 0, %s114
      %s117 = sphi 0, %s116
      %s131 = sphi 0, %s117
      %s135 = sphi 0, %s135
      %s137 = sphi 0, %s135
      %s138 = sphi 0, %s137
      %s152 = sphi 0, %s138
      %s156 = sphi 0, %s156
      %s158 = sphi 0, %s156
      %s159 = sphi 0, %s158
      %s173 = sphi 0, %s159
      %s177 = sphi 0, %s177
      %s179 = sphi 0, %s177
      %s180 = sphi 0, %s179
      %s194 = sphi 0, %s180
      %s198 = sphi 0, %s198
      %s200 = sphi 0, %s198
      %s201 = sphi 0, %s200
      %s215 = sphi 0, %s201
      %s219 = sphi 0, %s219
      %s221 = sphi 0, %s219
      %s222 = sphi 0, %s221
      %s236 = sphi 0, %s222
      %s240 = sphi 0, %s240
      %s242 = sphi 0, %s240
      %s243 = sphi 0, %s242
      %s257 = sphi 0, %s243
      %s263 = sphi 0, %s265
      %s266 = sphi 0, %s263
      %s267 = sphi 0, %s266
      %s283 = sphi 0, %s267
    $region4: #{bayer_nn_forward.1} parent=1 // loop_header_branch
      %20 = sbr.rel (%p18) target = $region8
    $region5: #{bayer_nn_forward.1} parent=1 // loop_body
      %s22 = ssub.s32 %s17, 1
      %s23 = ssub.s32 %s17, 2
      %s24 = sadd.s32 %s17, 1
      %s25 = ssub.s32 %s17, %s24
      %p26 = scmp.eq.s32.totalorder %s25, 0
      %s28 = sadd.s32 %s27, 1
      %s29 = scalar_select %p26, %s27, %s28
      %p32 = pneg %p26
      %p33 = scmp.eq.s32.totalorder %s17, 2
      %p34 = por %p32, %p33
      %p35 = scmp.ne.s32.totalorder %s27, %s30
      %p36 = scmp.eq.s32.totalorder %s17, 0
      %p37 = por %p35, %p36
      %p38 = scmp.ne.s32.totalorder %s27, %s30
      %p39 = scmp.eq.s32.totalorder %s22, 2
      %p40 = por %p38, %p39
      %p41 = scmp.ne.s32.totalorder %s30, %s31
      %p42 = scmp.eq.s32.totalorder %s22, 0
      %p43 = por %p41, %p42
      %p44 = scmp.ne.s32.totalorder %s30, %s31
      %p45 = scmp.eq.s32.totalorder %s23, 2
      %p46 = por %p44, %p45
      %p48 = scmp.ne.s32.totalorder %s31, %s47
      %p49 = scmp.eq.s32.totalorder %s23, 0
      %p50 = por %p48, %p49
      %s52 = sadd.s32 %s51, 1
      %p55 = scmp.eq.s32.totalorder %s17, 2
      %p56 = scmp.ne.s32.totalorder %s51, %s53
      %p57 = scmp.eq.s32.totalorder %s17, 0
      %p58 = por %p56, %p57
      %p59 = scmp.ne.s32.totalorder %s51, %s53
      %p60 = scmp.eq.s32.totalorder %s22, 2
      %p61 = por %p59, %p60
      %p62 = scmp.ne.s32.totalorder %s53, %s54
      %p63 = scmp.eq.s32.totalorder %s22, 0
      %p64 = por %p62, %p63
      %p65 = scmp.ne.s32.totalorder %s53, %s54
      %p66 = scmp.eq.s32.totalorder %s23, 2
      %p67 = por %p65, %p66
      %p69 = scmp.ne.s32.totalorder %s54, %s68
      %p70 = scmp.eq.s32.totalorder %s23, 0
      %p71 = por %p69, %p70
      %s73 = sadd.s32 %s72, 1
      %p76 = scmp.eq.s32.totalorder %s17, 2
      %p77 = scmp.ne.s32.totalorder %s72, %s74
      %p78 = scmp.eq.s32.totalorder %s17, 0
      %p79 = por %p77, %p78
      %p80 = scmp.ne.s32.totalorder %s72, %s74
      %p81 = scmp.eq.s32.totalorder %s22, 2
      %p82 = por %p80, %p81
      %p83 = scmp.ne.s32.totalorder %s74, %s75
      %p84 = scmp.eq.s32.totalorder %s22, 0
      %p85 = por %p83, %p84
      %p86 = scmp.ne.s32.totalorder %s74, %s75
      %p87 = scmp.eq.s32.totalorder %s23, 2
      %p88 = por %p86, %p87
      %p90 = scmp.ne.s32.totalorder %s75, %s89
      %p91 = scmp.eq.s32.totalorder %s23, 0
      %p92 = por %p90, %p91
      %s94 = sadd.s32 %s93, 1
      %p97 = scmp.eq.s32.totalorder %s17, 2
      %p98 = scmp.ne.s32.totalorder %s93, %s95
      %p99 = scmp.eq.s32.totalorder %s17, 0
      %p100 = por %p98, %p99
      %p101 = scmp.ne.s32.totalorder %s93, %s95
      %p102 = scmp.eq.s32.totalorder %s22, 2
      %p103 = por %p101, %p102
      %p104 = scmp.ne.s32.totalorder %s95, %s96
      %p105 = scmp.eq.s32.totalorder %s22, 0
      %p106 = por %p104, %p105
      %p107 = scmp.ne.s32.totalorder %s95, %s96
      %p108 = scmp.eq.s32.totalorder %s23, 2
      %p109 = por %p107, %p108
      %p111 = scmp.ne.s32.totalorder %s96, %s110
      %p112 = scmp.eq.s32.totalorder %s23, 0
      %p113 = por %p111, %p112
      %s115 = sadd.s32 %s114, 1
      %p118 = scmp.eq.s32.totalorder %s17, 2
      %p119 = scmp.ne.s32.totalorder %s114, %s116
      %p120 = scmp.eq.s32.totalorder %s17, 0
      %p121 = por %p119, %p120
      %p122 = scmp.ne.s32.totalorder %s114, %s116
      %p123 = scmp.eq.s32.totalorder %s22, 2
      %p124 = por %p122, %p123
      %p125 = scmp.ne.s32.totalorder %s116, %s117
      %p126 = scmp.eq.s32.totalorder %s22, 0
      %p127 = por %p125, %p126
      %p128 = scmp.ne.s32.totalorder %s116, %s117
      %p129 = scmp.eq.s32.totalorder %s23, 2
      %p130 = por %p128, %p129
      %p132 = scmp.ne.s32.totalorder %s117, %s131
      %p133 = scmp.eq.s32.totalorder %s23, 0
      %p134 = por %p132, %p133
      %s136 = sadd.s32 %s135, 1
      %p139 = scmp.eq.s32.totalorder %s17, 2
      %p140 = scmp.ne.s32.totalorder %s135, %s137
      %p141 = scmp.eq.s32.totalorder %s17, 0
      %p142 = por %p140, %p141
      %p143 = scmp.ne.s32.totalorder %s135, %s137
      %p144 = scmp.eq.s32.totalorder %s22, 2
      %p145 = por %p143, %p144
      %p146 = scmp.ne.s32.totalorder %s137, %s138
      %p147 = scmp.eq.s32.totalorder %s22, 0
      %p148 = por %p146, %p147
      %p149 = scmp.ne.s32.totalorder %s137, %s138
      %p150 = scmp.eq.s32.totalorder %s23, 2
      %p151 = por %p149, %p150
      %p153 = scmp.ne.s32.totalorder %s138, %s152
      %p154 = scmp.eq.s32.totalorder %s23, 0
      %p155 = por %p153, %p154
      %s157 = sadd.s32 %s156, 1
      %p160 = scmp.eq.s32.totalorder %s17, 2
      %p161 = scmp.ne.s32.totalorder %s156, %s158
      %p162 = scmp.eq.s32.totalorder %s17, 0
      %p163 = por %p161, %p162
      %p164 = scmp.ne.s32.totalorder %s156, %s158
      %p165 = scmp.eq.s32.totalorder %s22, 2
      %p166 = por %p164, %p165
      %p167 = scmp.ne.s32.totalorder %s158, %s159
      %p168 = scmp.eq.s32.totalorder %s22, 0
      %p169 = por %p167, %p168
      %p170 = scmp.ne.s32.totalorder %s158, %s159
      %p171 = scmp.eq.s32.totalorder %s23, 2
      %p172 = por %p170, %p171
      %p174 = scmp.ne.s32.totalorder %s159, %s173
      %p175 = scmp.eq.s32.totalorder %s23, 0
      %p176 = por %p174, %p175
      %s178 = sadd.s32 %s177, 1
      %p181 = scmp.eq.s32.totalorder %s17, 2
      %p182 = scmp.ne.s32.totalorder %s177, %s179
      %p183 = scmp.eq.s32.totalorder %s17, 0
      %p184 = por %p182, %p183
      %p185 = scmp.ne.s32.totalorder %s177, %s179
      %p186 = scmp.eq.s32.totalorder %s22, 2
      %p187 = por %p185, %p186
      %p188 = scmp.ne.s32.totalorder %s179, %s180
      %p189 = scmp.eq.s32.totalorder %s22, 0
      %p190 = por %p188, %p189
      %p191 = scmp.ne.s32.totalorder %s179, %s180
      %p192 = scmp.eq.s32.totalorder %s23, 2
      %p193 = por %p191, %p192
      %p195 = scmp.ne.s32.totalorder %s180, %s194
      %p196 = scmp.eq.s32.totalorder %s23, 0
      %p197 = por %p195, %p196
      %s199 = sadd.s32 %s198, 1
      %p202 = scmp.eq.s32.totalorder %s17, 2
      %p203 = scmp.ne.s32.totalorder %s198, %s200
      %p204 = scmp.eq.s32.totalorder %s17, 0
      %p205 = por %p203, %p204
      %p206 = scmp.ne.s32.totalorder %s198, %s200
      %p207 = scmp.eq.s32.totalorder %s22, 2
      %p208 = por %p206, %p207
      %p209 = scmp.ne.s32.totalorder %s200, %s201
      %p210 = scmp.eq.s32.totalorder %s22, 0
      %p211 = por %p209, %p210
      %p212 = scmp.ne.s32.totalorder %s200, %s201
      %p213 = scmp.eq.s32.totalorder %s23, 2
      %p214 = por %p212, %p213
      %p216 = scmp.ne.s32.totalorder %s201, %s215
      %p217 = scmp.eq.s32.totalorder %s23, 0
      %p218 = por %p216, %p217
      %s220 = sadd.s32 %s219, 1
      %p223 = scmp.eq.s32.totalorder %s17, 2
      %p224 = scmp.ne.s32.totalorder %s219, %s221
      %p225 = scmp.eq.s32.totalorder %s17, 0
      %p226 = por %p224, %p225
      %p227 = scmp.ne.s32.totalorder %s219, %s221
      %p228 = scmp.eq.s32.totalorder %s22, 2
      %p229 = por %p227, %p228
      %p230 = scmp.ne.s32.totalorder %s221, %s222
      %p231 = scmp.eq.s32.totalorder %s22, 0
      %p232 = por %p230, %p231
      %p233 = scmp.ne.s32.totalorder %s221, %s222
      %p234 = scmp.eq.s32.totalorder %s23, 2
      %p235 = por %p233, %p234
      %p237 = scmp.ne.s32.totalorder %s222, %s236
      %p238 = scmp.eq.s32.totalorder %s23, 0
      %p239 = por %p237, %p238
      %s241 = sadd.s32 %s240, 1
      %p244 = scmp.eq.s32.totalorder %s17, 2
      %p245 = scmp.ne.s32.totalorder %s240, %s242
      %p246 = scmp.eq.s32.totalorder %s17, 0
      %p247 = por %p245, %p246
      %p248 = scmp.ne.s32.totalorder %s240, %s242
      %p249 = scmp.eq.s32.totalorder %s22, 2
      %p250 = por %p248, %p249
      %p251 = scmp.ne.s32.totalorder %s242, %s243
      %p252 = scmp.eq.s32.totalorder %s22, 0
      %p253 = por %p251, %p252
      %p254 = scmp.ne.s32.totalorder %s242, %s243
      %p255 = scmp.eq.s32.totalorder %s23, 2
      %p256 = por %p254, %p255
      %p258 = scmp.ne.s32.totalorder %s243, %s257
      %p259 = scmp.eq.s32.totalorder %s23, 0
      %p260 = por %p258, %p259
      %s261 = ssub.s32 %s17, %s24
      %p262 = scmp.eq.s32.totalorder %s261, 0
      %s264 = sadd.s32 %s263, 1
      %s265 = scalar_select %p262, %s263, %s264
      %p268 = pneg %p262
      %p269 = scmp.eq.s32.totalorder %s17, 2
      %p270 = por %p268, %p269
      %p271 = scmp.ne.s32.totalorder %s263, %s266
      %p272 = scmp.eq.s32.totalorder %s17, 0
      %p273 = por %p271, %p272
      %p274 = scmp.ne.s32.totalorder %s263, %s266
      %p275 = scmp.eq.s32.totalorder %s22, 2
      %p276 = por %p274, %p275
      %p277 = scmp.ne.s32.totalorder %s266, %s267
      %p278 = scmp.eq.s32.totalorder %s22, 0
      %p279 = por %p277, %p278
      %p280 = scmp.ne.s32.totalorder %s266, %s267
      %p281 = scmp.eq.s32.totalorder %s23, 2
      %p282 = por %p280, %p281
      %p284 = scmp.ne.s32.totalorder %s267, %s283
      %p285 = scmp.eq.s32.totalorder %s23, 0
      %p286 = por %p284, %p285
      %p287 = scmp.le.s32.totalorder 1, %s17
      %p288 = scmp.lt.s32.totalorder %s17, 4
      %p289 = pnand %p287, %p288
      %p290 = pneg %p289
      // Predicated region
      $region9: #{bayer_nn_forward.1} parent=5 // pred_check
        _
      $region10: #{bayer_nn_forward.1} parent=5 // pred_check_branch
        %292 = sbr.rel (%p289) target = $region12
      $region11: #{bayer_nn_forward.1} parent=5 // pred_region
        %s293 = ssub.s32 %s17, 1
        // Predicated region
        $region13: #{bayer_nn_forward.1} parent=11 // pred_check
          %p294 = pneg %p64
        $region14: #{bayer_nn_forward.1} parent=11 // pred_check_branch
          %296 = sbr.rel (%p294) target = $region16
        $region15: #{bayer_nn_forward.1} parent=11 // pred_region
          _
        $region16: #{bayer_nn_forward.1} parent=11 // pred_fallthru
          _
        // Predicated region
        $region17: #{bayer_nn_forward.1} parent=11 // pred_check
          %p297 = pneg %p85
        $region18: #{bayer_nn_forward.1} parent=11 // pred_check_branch
          %299 = sbr.rel (%p297) target = $region20
        $region19: #{bayer_nn_forward.1} parent=11 // pred_region
          _
        $region20: #{bayer_nn_forward.1} parent=11 // pred_fallthru
          _
        // Predicated region
        $region21: #{bayer_nn_forward.1} parent=11 // pred_check
          %p300 = pneg %p106
        $region22: #{bayer_nn_forward.1} parent=11 // pred_check_branch
          %302 = sbr.rel (%p300) target = $region24
        $region23: #{bayer_nn_forward.1} parent=11 // pred_region
          _
        $region24: #{bayer_nn_forward.1} parent=11 // pred_fallthru
          _
        // Predicated region
        $region25: #{bayer_nn_forward.1} parent=11 // pred_check
          %p303 = pneg %p127
        $region26: #{bayer_nn_forward.1} parent=11 // pred_check_branch
          %305 = sbr.rel (%p303) target = $region28
        $region27: #{bayer_nn_forward.1} parent=11 // pred_region
          _
        $region28: #{bayer_nn_forward.1} parent=11 // pred_fallthru
          _
        // Predicated region
        $region29: #{bayer_nn_forward.1} parent=11 // pred_check
          %p306 = pneg %p148
        $region30: #{bayer_nn_forward.1} parent=11 // pred_check_branch
          %308 = sbr.rel (%p306) target = $region32
        $region31: #{bayer_nn_forward.1} parent=11 // pred_region
          _
        $region32: #{bayer_nn_forward.1} parent=11 // pred_fallthru
          _
        // Predicated region
        $region33: #{bayer_nn_forward.1} parent=11 // pred_check
          %p309 = pneg %p169
        $region34: #{bayer_nn_forward.1} parent=11 // pred_check_branch
          %311 = sbr.rel (%p309) target = $region36
        $region35: #{bayer_nn_forward.1} parent=11 // pred_region
          _
        $region36: #{bayer_nn_forward.1} parent=11 // pred_fallthru
          _
        // Predicated region
        $region37: #{bayer_nn_forward.1} parent=11 // pred_check
          %p312 = pneg %p190
        $region38: #{bayer_nn_forward.1} parent=11 // pred_check_branch
          %314 = sbr.rel (%p312) target = $region40
        $region39: #{bayer_nn_forward.1} parent=11 // pred_region
          _
        $region40: #{bayer_nn_forward.1} parent=11 // pred_fallthru
          _
        // Predicated region
        $region41: #{bayer_nn_forward.1} parent=11 // pred_check
          %p315 = pneg %p211
        $region42: #{bayer_nn_forward.1} parent=11 // pred_check_branch
          %317 = sbr.rel (%p315) target = $region44
        $region43: #{bayer_nn_forward.1} parent=11 // pred_region
          _
        $region44: #{bayer_nn_forward.1} parent=11 // pred_fallthru
          _
        // Predicated region
        $region45: #{bayer_nn_forward.1} parent=11 // pred_check
          %p318 = pneg %p232
        $region46: #{bayer_nn_forward.1} parent=11 // pred_check_branch
          %320 = sbr.rel (%p318) target = $region48
        $region47: #{bayer_nn_forward.1} parent=11 // pred_region
          _
        $region48: #{bayer_nn_forward.1} parent=11 // pred_fallthru
          _
        // Predicated region
        $region49: #{bayer_nn_forward.1} parent=11 // pred_check
          %p321 = pneg %p253
        $region50: #{bayer_nn_forward.1} parent=11 // pred_check_branch
          %323 = sbr.rel (%p321) target = $region52
        $region51: #{bayer_nn_forward.1} parent=11 // pred_region
          _
        $region52: #{bayer_nn_forward.1} parent=11 // pred_fallthru
          _
      $region12: #{bayer_nn_forward.1} parent=5 // pred_fallthru
        _
      %p324 = scmp.lt.s32.totalorder %s17, 3
      // Predicated region
      $region53: #{bayer_nn_forward.1} parent=5 // pred_check
        %p325 = pneg %p324
      $region54: #{bayer_nn_forward.1} parent=5 // pred_check_branch
        %327 = sbr.rel (%p325) target = $region56
      $region55: #{bayer_nn_forward.1} parent=5 // pred_region
        // Predicated region
        $region57: #{bayer_nn_forward.1} parent=55 // pred_check
          %p328 = pneg %p37
        $region58: #{bayer_nn_forward.1} parent=55 // pred_check_branch
          %330 = sbr.rel (%p328) target = $region60
        $region59: #{bayer_nn_forward.1} parent=55 // pred_region
          %s331 = sand.u32 %s27, 1
          %s332 = sand.u32 %s27, 1
          %s333 = smul.addr %s332, 52
          %s334 = scalar_lea.vmem [#allocation2], %s333
          %s335 = smul.addr %s17, 4
          %s336 = scalar_lea.vmem %s0, %s335
          // Predicated region
          $region61: #{bayer_nn_forward.1} parent=59 // pred_check
            _
          $region62: #{bayer_nn_forward.1} parent=59 // pred_check_branch
            %338 = sbr.rel (0) target = $region64
          $region63: #{bayer_nn_forward.1} parent=59 // pred_region
            // Predicated region
            $region65: #{bayer_nn_forward.1} parent=63 // pred_check
              _
            $region66: #{bayer_nn_forward.1} parent=63 // pred_check_branch
              %340 = sbr.rel target = $region68
            $region67: #{bayer_nn_forward.1} parent=63 // pred_region
              // Predicated region
              $region80: #{bayer_nn_forward.1} parent=67 // pred_check
                _
              $region81: #{bayer_nn_forward.1} parent=67 // pred_check_branch
                %379 = sbr.rel (0) target = $region83
              $region82: #{bayer_nn_forward.1} parent=67 // pred_region
                loop: start=0, step=1, limit=1
                $region84: #{bayer_nn_forward.1} parent=82 // loop_pre_header
                  _
                $region85: #{bayer_nn_forward.1} parent=82 // loop_header
                  %s381 = sphi 0, %s385
                  %p382 = scmp.ge.s32.totalorder %s381, 1
                  %s386 = sphi %s336, %s336
                  %s387 = sphi %s334, %s334
                $region86: #{bayer_nn_forward.1} parent=82 // loop_header_branch
                  %384 = sbr.rel (%p382) target = $region90
                $region87: #{bayer_nn_forward.1} parent=82 // loop_body
                  _
                $region88: #{bayer_nn_forward.1} parent=82 // loop_footer
                  %s385 = sadd.s32 1, %s381
                $region89: #{bayer_nn_forward.1} parent=82 // loop_footer_branch
                  %380 = sbr.rel target = $region85
                $region90: #{bayer_nn_forward.1} parent=82 // loop_exit
                  _
                loop: start=0, step=1, limit=1
                $region91: #{bayer_nn_forward.1} parent=82 // loop_pre_header
                  _
                $region92: #{bayer_nn_forward.1} parent=82 // loop_header
                  %s390 = sphi 0, %s394
                  %p391 = scmp.ge.s32.totalorder %s390, 1
                  %s395 = sphi %s336, %s336
                  %s396 = sphi %s334, %s334
                $region93: #{bayer_nn_forward.1} parent=82 // loop_header_branch
                  %393 = sbr.rel (%p391) target = $region97
                $region94: #{bayer_nn_forward.1} parent=82 // loop_body
                  %v397 = vld [vmem:[%s395] sm:$0xf]
                  %398 = vst [vmem:[%s396] sm:$0xf] %v397
                  %v399 = vld [vmem:[%s395 + $0xc] sm:$0xf]
                  %400 = vst [vmem:[%s396 + $0x4] sm:$0xf] %v399
                  %v401 = vld [vmem:[%s395 + $0x18] sm:$0xf]
                  %402 = vst [vmem:[%s396 + $0x8] sm:$0xf] %v401
                  %v403 = vld [vmem:[%s395 + $0x24] sm:$0xf]
                  %404 = vst [vmem:[%s396 + $0xc] sm:$0xf] %v403
                  %v405 = vld [vmem:[%s395 + $0x30] sm:$0xf]
                  %406 = vst [vmem:[%s396 + $0x10] sm:$0xf] %v405
                  %v407 = vld [vmem:[%s395 + $0x3c] sm:$0xf]
                  %408 = vst [vmem:[%s396 + $0x14] sm:$0xf] %v407
                  %v409 = vld [vmem:[%s395 + $0x48] sm:$0xf]
                  %410 = vst [vmem:[%s396 + $0x18] sm:$0xf] %v409
                  %v411 = vld [vmem:[%s395 + $0x54] sm:$0xf]
                  %412 = vst [vmem:[%s396 + $0x1c] sm:$0xf] %v411
                  %v413 = vld [vmem:[%s395 + $0x60] sm:$0xf]
                  %414 = vst [vmem:[%s396 + $0x20] sm:$0xf] %v413
                  %v415 = vld [vmem:[%s395 + $0x6c] sm:$0xf]
                  %416 = vst [vmem:[%s396 + $0x24] sm:$0xf] %v415
                  %v417 = vld [vmem:[%s395 + $0x78] sm:$0xf]
                  %418 = vst [vmem:[%s396 + $0x28] sm:$0xf] %v417
                  %v419 = vld [vmem:[%s395 + $0x84] sm:$0xf]
                  %420 = vst [vmem:[%s396 + $0x2c] sm:$0xf] %v419
                  %v421 = vld [vmem:[%s395 + $0x90] sm:$0xf]
                  %422 = vst [vmem:[%s396 + $0x30] sm:$0xf] %v421
                $region95: #{bayer_nn_forward.1} parent=82 // loop_footer
                  %s394 = sadd.s32 1, %s390
                $region96: #{bayer_nn_forward.1} parent=82 // loop_footer_branch
                  %389 = sbr.rel target = $region92
                $region97: #{bayer_nn_forward.1} parent=82 // loop_exit
                  _
              $region83: #{bayer_nn_forward.1} parent=67 // pred_fallthru
                _
            $region68: #{bayer_nn_forward.1} parent=63 // pred_fallthru
              _
            // Predicated region
            $region69: #{bayer_nn_forward.1} parent=63 // pred_check
              _
            $region70: #{bayer_nn_forward.1} parent=63 // pred_check_branch
              %342 = sbr.rel (0) target = $region72
            $region71: #{bayer_nn_forward.1} parent=63 // pred_region
              loop: start=0, step=1, limit=1
              $region73: #{bayer_nn_forward.1} parent=71 // loop_pre_header
                _
              $region74: #{bayer_nn_forward.1} parent=71 // loop_header
                %s345 = sphi 0, %s349
                %p346 = scmp.ge.s32.totalorder %s345, 1
                %s350 = sphi %s336, %s336
                %s351 = sphi %s334, %s334
              $region75: #{bayer_nn_forward.1} parent=71 // loop_header_branch
                %348 = sbr.rel (%p346) target = $region79
              $region76: #{bayer_nn_forward.1} parent=71 // loop_body
                %v352 = vld [vmem:[%s350] sm:$0xf]
                %353 = vst [vmem:[%s351] sm:$0xf] %v352
                %v354 = vld [vmem:[%s350 + $0xc] sm:$0xf]
                %355 = vst [vmem:[%s351 + $0x4] sm:$0xf] %v354
                %v356 = vld [vmem:[%s350 + $0x18] sm:$0xf]
                %357 = vst [vmem:[%s351 + $0x8] sm:$0xf] %v356
                %v358 = vld [vmem:[%s350 + $0x24] sm:$0xf]
                %359 = vst [vmem:[%s351 + $0xc] sm:$0xf] %v358
                %v360 = vld [vmem:[%s350 + $0x30] sm:$0xf]
                %361 = vst [vmem:[%s351 + $0x10] sm:$0xf] %v360
                %v362 = vld [vmem:[%s350 + $0x3c] sm:$0xf]
                %363 = vst [vmem:[%s351 + $0x14] sm:$0xf] %v362
                %v364 = vld [vmem:[%s350 + $0x48] sm:$0xf]
                %365 = vst [vmem:[%s351 + $0x18] sm:$0xf] %v364
                %v366 = vld [vmem:[%s350 + $0x54] sm:$0xf]
                %367 = vst [vmem:[%s351 + $0x1c] sm:$0xf] %v366
                %v368 = vld [vmem:[%s350 + $0x60] sm:$0xf]
                %369 = vst [vmem:[%s351 + $0x20] sm:$0xf] %v368
                %v370 = vld [vmem:[%s350 + $0x6c] sm:$0xf]
                %371 = vst [vmem:[%s351 + $0x24] sm:$0xf] %v370
                %v372 = vld [vmem:[%s350 + $0x78] sm:$0xf]
                %373 = vst [vmem:[%s351 + $0x28] sm:$0xf] %v372
                %v374 = vld [vmem:[%s350 + $0x84] sm:$0xf]
                %375 = vst [vmem:[%s351 + $0x2c] sm:$0xf] %v374
                %v376 = vld [vmem:[%s350 + $0x90] sm:$0xf]
                %377 = vst [vmem:[%s351 + $0x30] sm:$0xf] %v376
              $region77: #{bayer_nn_forward.1} parent=71 // loop_footer
                %s349 = sadd.s32 1, %s345
              $region78: #{bayer_nn_forward.1} parent=71 // loop_footer_branch
                %344 = sbr.rel target = $region74
              $region79: #{bayer_nn_forward.1} parent=71 // loop_exit
                _
            $region72: #{bayer_nn_forward.1} parent=63 // pred_fallthru
              _
          $region64: #{bayer_nn_forward.1} parent=59 // pred_fallthru
            _
          %423 = vnop
        $region60: #{bayer_nn_forward.1} parent=55 // pred_fallthru
          _
      $region56: #{bayer_nn_forward.1} parent=5 // pred_fallthru
        _
      %p424 = scmp.le.s32.totalorder 1, %s17
      %p425 = scmp.lt.s32.totalorder %s17, 4
      %p426 = pnand %p424, %p425
      %p427 = pneg %p426
      // Predicated region
      $region98: #{bayer_nn_forward.1} parent=5 // pred_check
        _
      $region99: #{bayer_nn_forward.1} parent=5 // pred_check_branch
        %429 = sbr.rel (%p426) target = $region101
      $region100: #{bayer_nn_forward.1} parent=5 // pred_region
        %s430 = ssub.s32 %s17, 1
        %s431 = sand.u32 %s30, 1
        %s432 = sand.u32 %s30, 1
        %s433 = smul.addr %s432, 52
        %s434 = scalar_lea.vmem [#allocation2], %s433
        // Predicated region
        $region102: #{bayer_nn_forward.1} parent=100 // pred_check
          %p435 = pneg %p43
        $region103: #{bayer_nn_forward.1} parent=100 // pred_check_branch
          %437 = sbr.rel (%p435) target = $region105
        $region104: #{bayer_nn_forward.1} parent=100 // pred_region
          _
        $region105: #{bayer_nn_forward.1} parent=100 // pred_fallthru
          _
        %s438 = sand.u32 %s30, 1
        %s439 = sand.u32 %s30, 1
        %s440 = smul.addr %s439, 52
        %s441 = scalar_lea.vmem [#allocation2], %s440
        %p442 = pneg %p43
        %p443 = pneg %p40
        %p444 = pneg %p64
        %p445 = pneg %p61
        %p446 = pneg %p85
        %p447 = pneg %p82
        %p448 = pneg %p106
        %p449 = pneg %p103
        %p450 = pneg %p127
        %p451 = pneg %p124
        %p452 = pneg %p148
        %p453 = pneg %p145
        %p454 = pneg %p169
        %p455 = pneg %p166
        %p456 = pneg %p190
        %p457 = pneg %p187
        %p458 = pneg %p211
        %p459 = pneg %p208
        %p460 = pneg %p232
        %p461 = pneg %p229
        %p462 = pneg %p253
        %p463 = pneg %p250
        %p464 = pneg %p279
        %p465 = pneg %p276
        %s466 = sand.u32 %s266, 1
        %s467 = sand.u32 %s266, 1
        %s468 = smul.addr %s467, 16
        %s469 = scalar_lea.vmem [#allocation3], %s468
        %v471 = vld [vmem:[%s434] sm:$0xf]
        %v472 = vld [vmem:[%s434 + $0x4] sm:$0xf]
        %v473 = vld [vmem:[%s434 + $0x8] sm:$0xf]
        %v474 = vld [vmem:[%s434 + $0xc] sm:$0xf]
        %v475 = vld [vmem:[%s434 + $0x10] sm:$0xf]
        %v476 = vld [vmem:[%s434 + $0x14] sm:$0xf]
        %v477 = vld [vmem:[%s434 + $0x18] sm:$0xf]
        %v478 = vld [vmem:[%s434 + $0x1c] sm:$0xf]
        %v479 = vld [vmem:[%s434 + $0x20] sm:$0xf]
        %v480 = vld [vmem:[%s434 + $0x24] sm:$0xf]
        %v481 = vld [vmem:[%s434 + $0x28] sm:$0xf]
        %v482 = vld [vmem:[%s434 + $0x2c] sm:$0xf]
        %v483 = vld [vmem:[%s434 + $0x30] sm:$0x3]
        %v484 = vunpack.c.l.bf16 %v471
        %v485 = vunpack.c.l.bf16 %v472
        %v486 = vunpack.c.l.bf16 %v473
        %v487 = vunpack.c.l.bf16 %v474
        %v488 = vunpack.c.l.bf16 %v475
        %v489 = vunpack.c.l.bf16 %v476
        %v490 = vunpack.c.l.bf16 %v477
        %v491 = vunpack.c.l.bf16 %v478
        %v492 = vunpack.c.l.bf16 %v479
        %v493 = vunpack.c.l.bf16 %v480
        %v494 = vunpack.c.l.bf16 %v481
        %v495 = vunpack.c.l.bf16 %v482
        %v496 = vunpack.c.l.bf16 %v483
        %v497 = vadd.f32 %v484, 1.0
        %v498 = vadd.f32 %v485, 1.0
        %v499 = vadd.f32 %v486, 1.0
        %v500 = vadd.f32 %v487, 1.0
        %v501 = vadd.f32 %v488, 1.0
        %v502 = vadd.f32 %v489, 1.0
        %v503 = vadd.f32 %v490, 1.0
        %v504 = vadd.f32 %v491, 1.0
        %v505 = vadd.f32 %v492, 1.0
        %v506 = vadd.f32 %v493, 1.0
        %v507 = vadd.f32 %v494, 1.0
        %v508 = vadd.f32 %v495, 1.0
        %v509 = vadd.f32 %v496, 1.0
        %v510 = vlog2.pop %v497
        %v511 = vmul.f32 %v510, 0.6931472
        %v512 = vlog2.pop %v498
        %v513 = vmul.f32 %v512, 0.6931472
        %v514 = vlog2.pop %v499
        %v515 = vmul.f32 %v514, 0.6931472
        %v516 = vlog2.pop %v500
        %v517 = vmul.f32 %v516, 0.6931472
        %v518 = vlog2.pop %v501
        %v519 = vmul.f32 %v518, 0.6931472
        %v520 = vlog2.pop %v502
        %v521 = vmul.f32 %v520, 0.6931472
        %v522 = vlog2.pop %v503
        %v523 = vmul.f32 %v522, 0.6931472
        %v524 = vlog2.pop %v504
        %v525 = vmul.f32 %v524, 0.6931472
        %v526 = vlog2.pop %v505
        %v527 = vmul.f32 %v526, 0.6931472
        %v528 = vlog2.pop %v506
        %v529 = vmul.f32 %v528, 0.6931472
        %v530 = vlog2.pop %v507
        %v531 = vmul.f32 %v530, 0.6931472
        %v532 = vlog2.pop %v508
        %v533 = vmul.f32 %v532, 0.6931472
        %v534 = vlog2.pop %v509
        %v535 = vmul.f32 %v534, 0.6931472
        %v536 = vadd.f32 %v511, %v513
        %v537 = vadd.f32 %v536, %v515
        %v538 = vadd.f32 %v537, %v517
        %v539 = vadd.f32 %v538, %v519
        %v540 = vadd.f32 %v539, %v521
        %v541 = vadd.f32 %v540, %v523
        %v542 = vadd.f32 %v541, %v525
        %v543 = vadd.f32 %v542, %v527
        %v544 = vadd.f32 %v543, %v529
        %v545 = vadd.f32 %v544, %v531
        %v546 = vadd.f32 %v545, %v533
        %vm547 = vcmask 1043456
        %v548 = vsel %vm547, %v535, 0.0
        %v549 = vadd.f32 %v546, %v548
        %v550 = vrot.slane %v549, 4
        %v551 = vadd.f32 %v549, %v550
        %v552 = vrot.slane %v551, 2
        %v553 = vadd.f32 %v551, %v552
        %v554 = vrot.slane %v553, 1
        %v555 = vadd.f32 %v553, %v554
        %v556 = vrcp.pop 100.0
        %v557 = vmul.f32 %v555, %v556
        %v558 = vsub.f32 0.0, %v557
        %v559 = vmul.f32 %v558, 1.442695
        %v560 = vpow.pop %v559
        %v561 = vmul.f32 %v557, 1.442695
        %v562 = vpow.pop %v561
        %v563 = vmul.f32 %v497, %v560
        %v564 = vmul.f32 %v498, %v560
        %v565 = vmul.f32 %v499, %v560
        %v566 = vmul.f32 %v500, %v560
        %v567 = vmul.f32 %v501, %v560
        %v568 = vmul.f32 %v502, %v560
        %v569 = vmul.f32 %v503, %v560
        %v570 = vmul.f32 %v504, %v560
        %v571 = vmul.f32 %v505, %v560
        %v572 = vmul.f32 %v506, %v560
        %v573 = vmul.f32 %v507, %v560
        %v574 = vmul.f32 %v508, %v560
        %v575 = vmul.f32 %v509, %v560
        %v576 = vsub.f32 %v563, 1.0
        %v577 = vsub.f32 %v564, 1.0
        %v578 = vsub.f32 %v565, 1.0
        %v579 = vsub.f32 %v566, 1.0
        %v580 = vsub.f32 %v567, 1.0
        %v581 = vsub.f32 %v568, 1.0
        %v582 = vsub.f32 %v569, 1.0
        %v583 = vsub.f32 %v570, 1.0
        %v584 = vsub.f32 %v571, 1.0
        %v585 = vsub.f32 %v572, 1.0
        %v586 = vsub.f32 %v573, 1.0
        %v587 = vsub.f32 %v574, 1.0
        %v588 = vsub.f32 %v575, 1.0
        %v589 = vld [vmem:[%s1] sm:$0xf]
        %v590 = vld [vmem:[%s1 + $0x4] sm:$0xf]
        %v591 = vld [vmem:[%s1 + $0x8] sm:$0xf]
        %v592 = vld [vmem:[%s1 + $0xc] sm:$0xf]
        %v593 = vld [vmem:[%s1 + $0x10] sm:$0xf]
        %v594 = vld [vmem:[%s1 + $0x14] sm:$0xf]
        %v595 = vld [vmem:[%s1 + $0x18] sm:$0xf]
        %v596 = vld [vmem:[%s1 + $0x1c] sm:$0xf]
        %v597 = vld [vmem:[%s1 + $0x20] sm:$0xf]
        %v598 = vld [vmem:[%s1 + $0x24] sm:$0xf]
        %v599 = vld [vmem:[%s1 + $0x28] sm:$0xf]
        %v600 = vld [vmem:[%s1 + $0x2c] sm:$0xf]
        %v601 = vld [vmem:[%s1 + $0x30] sm:$0xf]
        %v602 = vld [vmem:[%s1 + $0x34] sm:$0xf]
        %v603 = vld [vmem:[%s1 + $0x38] sm:$0xf]
        %v604 = vld [vmem:[%s1 + $0x3c] sm:$0xf]
        %v605 = vpack.c.bf16 %v577, %v576
        %v606 = vpack.c.bf16 %v579, %v578
        %v607 = vpack.c.bf16 %v581, %v580
        %v608 = vpack.c.bf16 %v583, %v582
        %v609 = vpack.c.bf16 %v585, %v584
        %v610 = vpack.c.bf16 %v587, %v586
        %v611 = vpack.c.bf16 %v588, %v588
        %v612 = vld [vmem:[%s2] sm:$0xff]
        %v613 = vld [vmem:[%s2 + $0x8] sm:$0xff]
        %v614 = vld [vmem:[%s2 + $0x10] sm:$0xff]
        %v615 = vld [vmem:[%s2 + $0x18] sm:$0xff]
        %v616 = vld [vmem:[%s2 + $0x20] sm:$0xff]
        %v617 = vld [vmem:[%s2 + $0x28] sm:$0xff]
        %v618 = vld [vmem:[%s2 + $0x30] sm:$0xff]
        %v619 = vld [vmem:[%s2 + $0x38] sm:$0xff]
        %v620 = vld [vmem:[%s2 + $0x40] sm:$0xff]
        %v621 = vld [vmem:[%s2 + $0x48] sm:$0xff]
        %v622 = vld [vmem:[%s2 + $0x50] sm:$0xff]
        %v623 = vld [vmem:[%s2 + $0x58] sm:$0xff]
        %v624 = vld [vmem:[%s2 + $0x60] sm:$0xff]
        %v625 = vld [vmem:[%s2 + $0x68] sm:$0xff]
        %v626 = vld [vmem:[%s2 + $0x70] sm:$0xff]
        %v627 = vld [vmem:[%s2 + $0x78] sm:$0xff]
        %629 = vset.pattern.permute.xlu0 0
        %630 = vperm.xlu0 %629, %v612
        %v631 = vpop.permute.xlu0 %630
        %634 = vset.pattern.permute.xlu0 0
        %635 = vperm.xlu0 %634, %v613
        %v636 = vpop.permute.xlu0 %635
        %639 = vset.pattern.permute.xlu0 0
        %640 = vperm.xlu0 %639, %v614
        %v641 = vpop.permute.xlu0 %640
        %644 = vset.pattern.permute.xlu0 0
        %645 = vperm.xlu0 %644, %v615
        %v646 = vpop.permute.xlu0 %645
        %649 = vset.pattern.permute.xlu0 0
        %650 = vperm.xlu0 %649, %v616
        %v651 = vpop.permute.xlu0 %650
        %654 = vset.pattern.permute.xlu0 0
        %655 = vperm.xlu0 %654, %v617
        %v656 = vpop.permute.xlu0 %655
        %659 = vset.pattern.permute.xlu0 0
        %660 = vperm.xlu0 %659, %v618
        %v661 = vpop.permute.xlu0 %660
        %664 = vset.pattern.permute.xlu0 0
        %665 = vperm.xlu0 %664, %v619
        %v666 = vpop.permute.xlu0 %665
        %669 = vset.pattern.permute.xlu0 0
        %670 = vperm.xlu0 %669, %v620
        %v671 = vpop.permute.xlu0 %670
        %674 = vset.pattern.permute.xlu0 0
        %675 = vperm.xlu0 %674, %v621
        %v676 = vpop.permute.xlu0 %675
        %679 = vset.pattern.permute.xlu0 0
        %680 = vperm.xlu0 %679, %v622
        %v681 = vpop.permute.xlu0 %680
        %684 = vset.pattern.permute.xlu0 0
        %685 = vperm.xlu0 %684, %v623
        %v686 = vpop.permute.xlu0 %685
        %689 = vset.pattern.permute.xlu0 0
        %690 = vperm.xlu0 %689, %v624
        %v691 = vpop.permute.xlu0 %690
        %694 = vset.pattern.permute.xlu0 0
        %695 = vperm.xlu0 %694, %v625
        %v696 = vpop.permute.xlu0 %695
        %699 = vset.pattern.permute.xlu0 0
        %700 = vperm.xlu0 %699, %v626
        %v701 = vpop.permute.xlu0 %700
        %704 = vset.pattern.permute.xlu0 0
        %705 = vperm.xlu0 %704, %v627
        %v706 = vpop.permute.xlu0 %705
        %v724 = vunpack.c.l.b16 %v589
        %v725 = vunpack.c.l.b16 %v590
        %v726 = vunpack.c.l.b16 %v591
        %v727 = vunpack.c.l.b16 %v592
        %v728 = vunpack.c.l.b16 %v593
        %v729 = vunpack.c.l.b16 %v594
        %v730 = vunpack.c.l.b16 %v595
        %v731 = vunpack.c.l.b16 %v596
        %v732 = vunpack.c.l.b16 %v597
        %v733 = vunpack.c.l.b16 %v598
        %v734 = vunpack.c.l.b16 %v599
        %v735 = vunpack.c.l.b16 %v600
        %v736 = vunpack.c.l.b16 %v601
        %v737 = vunpack.c.l.b16 %v602
        %v738 = vunpack.c.l.b16 %v603
        %v739 = vunpack.c.l.b16 %v604
        %v740 = vpack.c.b16 %v725, %v724
        %v741 = vpack.c.b16 %v727, %v726
        %v742 = vpack.c.b16 %v729, %v728
        %v743 = vpack.c.b16 %v731, %v730
        %v744 = vpack.c.b16 %v733, %v732
        %v745 = vpack.c.b16 %v735, %v734
        %v746 = vpack.c.b16 %v737, %v736
        %v747 = vpack.c.b16 %v739, %v738
        %vm748 = vcmask 818176
        %v750 = vsel %vm748, %v740, 0
        %v753 = vsel %vm748, %v741, 0
        %v756 = vsel %vm748, %v742, 0
        %v759 = vsel %vm748, %v743, 0
        %v762 = vsel %vm748, %v744, 0
        %v765 = vsel %vm748, %v745, 0
        %v768 = vsel %vm748, %v746, 0
        %v771 = vsel %vm748, %v747, 0
        %vm773 = vcmask 1041408
        %v775 = vsel %vm773, %v611, 0
        %777 = vmatprep.subr.bf16.mxu0 0
        %778 = vmatpush1.bf16.msra.mxu0 %v605
        %779 = vmatprep.subr.bf16.mxu0 0
        %780 = vmatpush1.bf16.msra.mxu0 %v606
        %781 = vmatprep.subr.bf16.mxu0 0
        %782 = vmatpush1.bf16.msra.mxu0 %v607
        %783 = vmatprep.subr.bf16.mxu0 0
        %784 = vmatpush1.bf16.msra.mxu0 %v608
        %785 = vmatprep.subr.bf16.mxu0 0
        %786 = vmatpush1.bf16.msra.mxu0 %v609
        %787 = vmatprep.subr.bf16.mxu0 0
        %788 = vmatpush1.bf16.msra.mxu0 %v610
        %789 = vmatprep.subr.bf16.mxu0 0
        %790 = vmatpush1.bf16.msra.mxu0 %v775
        %791 = vmatprep.subr.bf16.mxu0 0
        %792 = vmatpush1.bf16.msra.mxu0 0
        %793 = vmatprep.subr.bf16.mxu0 0
        %794 = vmatpush1.bf16.msra.mxu0 0
        %795 = vmatprep.subr.bf16.mxu0 0
        %796 = vmatpush1.bf16.msra.mxu0 0
        %797 = vmatprep.subr.bf16.mxu0 0
        %798 = vmatpush1.bf16.msra.mxu0 0
        %799 = vmatprep.subr.bf16.mxu0 0
        %800 = vmatpush1.bf16.msra.mxu0 0
        %801 = vmatprep.subr.bf16.mxu0 0
        %802 = vmatpush1.bf16.msra.mxu0 0
        %803 = vmatprep.subr.bf16.mxu0 0
        %804 = vmatpush1.bf16.msra.mxu0 0
        %805 = vmatprep.subr.bf16.mxu0 0
        %806 = vmatpush1.bf16.msra.mxu0 0
        %807 = vmatprep.subr.bf16.mxu0 0
        %808 = vmatpush1.bf16.msra.mxu0 0
        %809 = vmatprep.mubr.bf16.mxu0 0
        %810 = vmatmul.mubr.bf16.gmra.mrb[0].mxu0 %v750
        %v811 = vpop.f32.mrb[0].mxu0
        %v812 = vadd.f32 %v631, %v811
        %v813 = vpop.f32.mrb[0].mxu0
        %v814 = vpop.f32.mrb[0].mxu0
        %v815 = vadd.f32 %v636, %v814
        %v816 = vpop.f32.mrb[0].mxu0
        %817 = vmatprep.mubr.bf16.mxu0 0
        %818 = vmatmul.mubr.bf16.gmra.mrb[0].mxu0 %v753
        %v819 = vpop.f32.mrb[0].mxu0
        %v820 = vadd.f32 %v641, %v819
        %v821 = vpop.f32.mrb[0].mxu0
        %v822 = vpop.f32.mrb[0].mxu0
        %v823 = vadd.f32 %v646, %v822
        %v824 = vpop.f32.mrb[0].mxu0
        %825 = vmatprep.mubr.bf16.mxu0 0
        %826 = vmatmul.mubr.bf16.gmra.mrb[0].mxu0 %v756
        %v827 = vpop.f32.mrb[0].mxu0
        %v828 = vadd.f32 %v651, %v827
        %v829 = vpop.f32.mrb[0].mxu0
        %v830 = vpop.f32.mrb[0].mxu0
        %v831 = vadd.f32 %v656, %v830
        %v832 = vpop.f32.mrb[0].mxu0
        %833 = vmatprep.mubr.bf16.mxu0 0
        %834 = vmatmul.mubr.bf16.gmra.mrb[0].mxu0 %v759
        %v835 = vpop.f32.mrb[0].mxu0
        %v836 = vadd.f32 %v661, %v835
        %v837 = vpop.f32.mrb[0].mxu0
        %v838 = vpop.f32.mrb[0].mxu0
        %v839 = vadd.f32 %v666, %v838
        %v840 = vpop.f32.mrb[0].mxu0
        %841 = vmatprep.mubr.bf16.mxu0 0
        %842 = vmatmul.mubr.bf16.gmra.mrb[0].mxu0 %v762
        %v843 = vpop.f32.mrb[0].mxu0
        %v844 = vadd.f32 %v671, %v843
        %v845 = vpop.f32.mrb[0].mxu0
        %v846 = vpop.f32.mrb[0].mxu0
        %v847 = vadd.f32 %v676, %v846
        %v848 = vpop.f32.mrb[0].mxu0
        %849 = vmatprep.mubr.bf16.mxu0 0
        %850 = vmatmul.mubr.bf16.gmra.mrb[0].mxu0 %v765
        %v851 = vpop.f32.mrb[0].mxu0
        %v852 = vadd.f32 %v681, %v851
        %v853 = vpop.f32.mrb[0].mxu0
        %v854 = vpop.f32.mrb[0].mxu0
        %v855 = vadd.f32 %v686, %v854
        %v856 = vpop.f32.mrb[0].mxu0
        %857 = vmatprep.mubr.bf16.mxu0 0
        %858 = vmatmul.mubr.bf16.gmra.mrb[0].mxu0 %v768
        %v859 = vpop.f32.mrb[0].mxu0
        %v860 = vadd.f32 %v691, %v859
        %v861 = vpop.f32.mrb[0].mxu0
        %v862 = vpop.f32.mrb[0].mxu0
        %v863 = vadd.f32 %v696, %v862
        %v864 = vpop.f32.mrb[0].mxu0
        %865 = vmatprep.mubr.bf16.mxu0 0
        %866 = vmatmul.mubr.bf16.gmra.mrb[0].mxu0 %v771
        %v867 = vpop.f32.mrb[0].mxu0
        %v868 = vadd.f32 %v701, %v867
        %v869 = vpop.f32.mrb[0].mxu0
        %v870 = vpop.f32.mrb[0].mxu0
        %v871 = vadd.f32 %v706, %v870
        %v872 = vpop.f32.mrb[0].mxu0
        %873 = vdwg.mxu0
        %v874 = vmul.f32 %v812, 0.01
        %v875 = vmul.f32 %v815, 0.01
        %v876 = vmul.f32 %v820, 0.01
        %v877 = vmul.f32 %v823, 0.01
        %v878 = vmul.f32 %v828, 0.01
        %v879 = vmul.f32 %v831, 0.01
        %v880 = vmul.f32 %v836, 0.01
        %v881 = vmul.f32 %v839, 0.01
        %v882 = vmul.f32 %v844, 0.01
        %v883 = vmul.f32 %v847, 0.01
        %v884 = vmul.f32 %v852, 0.01
        %v885 = vmul.f32 %v855, 0.01
        %v886 = vmul.f32 %v860, 0.01
        %v887 = vmul.f32 %v863, 0.01
        %v888 = vmul.f32 %v868, 0.01
        %v889 = vmul.f32 %v871, 0.01
        %v890 = vmax.f32 %v812, %v874
        %v891 = vmax.f32 %v815, %v875
        %v892 = vmax.f32 %v820, %v876
        %v893 = vmax.f32 %v823, %v877
        %v894 = vmax.f32 %v828, %v878
        %v895 = vmax.f32 %v831, %v879
        %v896 = vmax.f32 %v836, %v880
        %v897 = vmax.f32 %v839, %v881
        %v898 = vmax.f32 %v844, %v882
        %v899 = vmax.f32 %v847, %v883
        %v900 = vmax.f32 %v852, %v884
        %v901 = vmax.f32 %v855, %v885
        %v902 = vmax.f32 %v860, %v886
        %v903 = vmax.f32 %v863, %v887
        %v904 = vmax.f32 %v868, %v888
        %v905 = vmax.f32 %v871, %v889
        %v906 = vld [vmem:[%s3] sm:$0xf]
        %v907 = vld [vmem:[%s3 + $0x4] sm:$0xf]
        %v908 = vld [vmem:[%s3 + $0x8] sm:$0xf]
        %v909 = vld [vmem:[%s3 + $0xc] sm:$0xf]
        %v910 = vld [vmem:[%s3 + $0x10] sm:$0xf]
        %v911 = vld [vmem:[%s3 + $0x14] sm:$0xf]
        %v912 = vld [vmem:[%s3 + $0x18] sm:$0xf]
        %v913 = vld [vmem:[%s3 + $0x1c] sm:$0xf]
        %v914 = vpack.c.bf16 %v891, %v890
        %v915 = vpack.c.bf16 %v893, %v892
        %v916 = vpack.c.bf16 %v895, %v894
        %v917 = vpack.c.bf16 %v897, %v896
        %v918 = vpack.c.bf16 %v899, %v898
        %v919 = vpack.c.bf16 %v901, %v900
        %v920 = vpack.c.bf16 %v903, %v902
        %v921 = vpack.c.bf16 %v905, %v904
        %v922 = vld [vmem:[%s4] sm:$0xff]
        %v923 = vld [vmem:[%s4 + $0x8] sm:$0xff]
        %v924 = vld [vmem:[%s4 + $0x10] sm:$0xff]
        %v925 = vld [vmem:[%s4 + $0x18] sm:$0xff]
        %v926 = vld [vmem:[%s4 + $0x20] sm:$0xff]
        %v927 = vld [vmem:[%s4 + $0x28] sm:$0xff]
        %v928 = vld [vmem:[%s4 + $0x30] sm:$0xff]
        %v929 = vld [vmem:[%s4 + $0x38] sm:$0xff]
        %931 = vset.pattern.permute.xlu0 0
        %932 = vperm.xlu0 %931, %v922
        %v933 = vpop.permute.xlu0 %932
        %936 = vset.pattern.permute.xlu0 0
        %937 = vperm.xlu0 %936, %v923
        %v938 = vpop.permute.xlu0 %937
        %941 = vset.pattern.permute.xlu0 0
        %942 = vperm.xlu0 %941, %v924
        %v943 = vpop.permute.xlu0 %942
        %946 = vset.pattern.permute.xlu0 0
        %947 = vperm.xlu0 %946, %v925
        %v948 = vpop.permute.xlu0 %947
        %951 = vset.pattern.permute.xlu0 0
        %952 = vperm.xlu0 %951, %v926
        %v953 = vpop.permute.xlu0 %952
        %956 = vset.pattern.permute.xlu0 0
        %957 = vperm.xlu0 %956, %v927
        %v958 = vpop.permute.xlu0 %957
        %961 = vset.pattern.permute.xlu0 0
        %962 = vperm.xlu0 %961, %v928
        %v963 = vpop.permute.xlu0 %962
        %966 = vset.pattern.permute.xlu0 0
        %967 = vperm.xlu0 %966, %v929
        %v968 = vpop.permute.xlu0 %967
        %v978 = vunpack.c.l.b16 %v906
        %v979 = vunpack.c.l.b16 %v907
        %v980 = vunpack.c.l.b16 %v908
        %v981 = vunpack.c.l.b16 %v909
        %v982 = vunpack.c.l.b16 %v910
        %v983 = vunpack.c.l.b16 %v911
        %v984 = vunpack.c.l.b16 %v912
        %v985 = vunpack.c.l.b16 %v913
        %v986 = vpack.c.b16 %v979, %v978
        %v987 = vpack.c.b16 %v981, %v980
        %v988 = vpack.c.b16 %v983, %v982
        %v989 = vpack.c.b16 %v985, %v984
        %994 = vmatprep.subr.bf16.mxu0 0
        %995 = vmatpush1.bf16.msra.mxu0 %v914
        %996 = vmatprep.subr.bf16.mxu0 0
        %997 = vmatpush1.bf16.msra.mxu0 %v915
        %998 = vmatprep.subr.bf16.mxu0 0
        %999 = vmatpush1.bf16.msra.mxu0 %v916
        %1000 = vmatprep.subr.bf16.mxu0 0
        %1001 = vmatpush1.bf16.msra.mxu0 %v917
        %1002 = vmatprep.subr.bf16.mxu0 0
        %1003 = vmatpush1.bf16.msra.mxu0 %v918
        %1004 = vmatprep.subr.bf16.mxu0 0
        %1005 = vmatpush1.bf16.msra.mxu0 %v919
        %1006 = vmatprep.subr.bf16.mxu0 0
        %1007 = vmatpush1.bf16.msra.mxu0 %v920
        %1008 = vmatprep.subr.bf16.mxu0 0
        %1009 = vmatpush1.bf16.msra.mxu0 %v921
        %1010 = vmatprep.subr.bf16.mxu0 0
        %1011 = vmatpush1.bf16.msra.mxu0 0
        %1012 = vmatprep.subr.bf16.mxu0 0
        %1013 = vmatpush1.bf16.msra.mxu0 0
        %1014 = vmatprep.subr.bf16.mxu0 0
        %1015 = vmatpush1.bf16.msra.mxu0 0
        %1016 = vmatprep.subr.bf16.mxu0 0
        %1017 = vmatpush1.bf16.msra.mxu0 0
        %1018 = vmatprep.subr.bf16.mxu0 0
        %1019 = vmatpush1.bf16.msra.mxu0 0
        %1020 = vmatprep.subr.bf16.mxu0 0
        %1021 = vmatpush1.bf16.msra.mxu0 0
        %1022 = vmatprep.subr.bf16.mxu0 0
        %1023 = vmatpush1.bf16.msra.mxu0 0
        %1024 = vmatprep.subr.bf16.mxu0 0
        %1025 = vmatpush1.bf16.msra.mxu0 0
        %1026 = vmatprep.mubr.bf16.mxu0 0
        %1027 = vmatmul.mubr.bf16.gmra.mrb[0].mxu0 %v986
        %v1028 = vpop.f32.mrb[0].mxu0
        %v1029 = vadd.f32 %v933, %v1028
        %v1030 = vpop.f32.mrb[0].mxu0
        %v1031 = vpop.f32.mrb[0].mxu0
        %v1032 = vadd.f32 %v938, %v1031
        %v1033 = vpop.f32.mrb[0].mxu0
        %1034 = vmatprep.mubr.bf16.mxu0 0
        %1035 = vmatmul.mubr.bf16.gmra.mrb[0].mxu0 %v987
        %v1036 = vpop.f32.mrb[0].mxu0
        %v1037 = vadd.f32 %v943, %v1036
        %v1038 = vpop.f32.mrb[0].mxu0
        %v1039 = vpop.f32.mrb[0].mxu0
        %v1040 = vadd.f32 %v948, %v1039
        %v1041 = vpop.f32.mrb[0].mxu0
        %1042 = vmatprep.mubr.bf16.mxu0 0
        %1043 = vmatmul.mubr.bf16.gmra.mrb[0].mxu0 %v988
        %v1044 = vpop.f32.mrb[0].mxu0
        %v1045 = vadd.f32 %v953, %v1044
        %v1046 = vpop.f32.mrb[0].mxu0
        %v1047 = vpop.f32.mrb[0].mxu0
        %v1048 = vadd.f32 %v958, %v1047
        %v1049 = vpop.f32.mrb[0].mxu0
        %1050 = vmatprep.mubr.bf16.mxu0 0
        %1051 = vmatmul.mubr.bf16.gmra.mrb[0].mxu0 %v989
        %v1052 = vpop.f32.mrb[0].mxu0
        %v1053 = vadd.f32 %v963, %v1052
        %v1054 = vpop.f32.mrb[0].mxu0
        %v1055 = vpop.f32.mrb[0].mxu0
        %v1056 = vadd.f32 %v968, %v1055
        %v1057 = vpop.f32.mrb[0].mxu0
        %1058 = vdwg.mxu0
        %v1059 = vmul.f32 %v1029, 0.01
        %v1060 = vmul.f32 %v1032, 0.01
        %v1061 = vmul.f32 %v1037, 0.01
        %v1062 = vmul.f32 %v1040, 0.01
        %v1063 = vmul.f32 %v1045, 0.01
        %v1064 = vmul.f32 %v1048, 0.01
        %v1065 = vmul.f32 %v1053, 0.01
        %v1066 = vmul.f32 %v1056, 0.01
        %v1067 = vmax.f32 %v1029, %v1059
        %v1068 = vmax.f32 %v1032, %v1060
        %v1069 = vmax.f32 %v1037, %v1061
        %v1070 = vmax.f32 %v1040, %v1062
        %v1071 = vmax.f32 %v1045, %v1063
        %v1072 = vmax.f32 %v1048, %v1064
        %v1073 = vmax.f32 %v1053, %v1065
        %v1074 = vmax.f32 %v1056, %v1066
        %v1075 = vld [vmem:[%s5] sm:$0xf]
        %v1076 = vld [vmem:[%s5 + $0x4] sm:$0xf]
        %v1077 = vld [vmem:[%s5 + $0x8] sm:$0xf]
        %v1078 = vld [vmem:[%s5 + $0xc] sm:$0xf]
        %v1079 = vld [vmem:[%s5 + $0x10] sm:$0xf]
        %v1080 = vld [vmem:[%s5 + $0x14] sm:$0xf]
        %v1081 = vld [vmem:[%s5 + $0x18] sm:$0xf]
        %v1082 = vld [vmem:[%s5 + $0x1c] sm:$0xf]
        %v1083 = vpack.c.bf16 %v1068, %v1067
        %v1084 = vpack.c.bf16 %v1070, %v1069
        %v1085 = vpack.c.bf16 %v1072, %v1071
        %v1086 = vpack.c.bf16 %v1074, %v1073
        %v1087 = vld [vmem:[%s6] sm:$0xff]
        %v1088 = vld [vmem:[%s6 + $0x8] sm:$0xff]
        %v1089 = vld [vmem:[%s6 + $0x10] sm:$0xff]
        %v1090 = vld [vmem:[%s6 + $0x18] sm:$0xff]
        %v1091 = vld [vmem:[%s6 + $0x20] sm:$0xff]
        %v1092 = vld [vmem:[%s6 + $0x28] sm:$0xff]
        %v1093 = vld [vmem:[%s6 + $0x30] sm:$0xff]
        %v1094 = vld [vmem:[%s6 + $0x38] sm:$0xff]
        %1096 = vset.pattern.permute.xlu0 0
        %1097 = vperm.xlu0 %1096, %v1087
        %v1098 = vpop.permute.xlu0 %1097
        %1101 = vset.pattern.permute.xlu0 0
        %1102 = vperm.xlu0 %1101, %v1088
        %v1103 = vpop.permute.xlu0 %1102
        %1106 = vset.pattern.permute.xlu0 0
        %1107 = vperm.xlu0 %1106, %v1089
        %v1108 = vpop.permute.xlu0 %1107
        %1111 = vset.pattern.permute.xlu0 0
        %1112 = vperm.xlu0 %1111, %v1090
        %v1113 = vpop.permute.xlu0 %1112
        %1116 = vset.pattern.permute.xlu0 0
        %1117 = vperm.xlu0 %1116, %v1091
        %v1118 = vpop.permute.xlu0 %1117
        %1121 = vset.pattern.permute.xlu0 0
        %1122 = vperm.xlu0 %1121, %v1092
        %v1123 = vpop.permute.xlu0 %1122
        %1126 = vset.pattern.permute.xlu0 0
        %1127 = vperm.xlu0 %1126, %v1093
        %v1128 = vpop.permute.xlu0 %1127
        %1131 = vset.pattern.permute.xlu0 0
        %1132 = vperm.xlu0 %1131, %v1094
        %v1133 = vpop.permute.xlu0 %1132
        %v1143 = vunpack.c.l.b16 %v1075
        %v1144 = vunpack.c.l.b16 %v1076
        %v1145 = vunpack.c.l.b16 %v1077
        %v1146 = vunpack.c.l.b16 %v1078
        %v1147 = vunpack.c.l.b16 %v1079
        %v1148 = vunpack.c.l.b16 %v1080
        %v1149 = vunpack.c.l.b16 %v1081
        %v1150 = vunpack.c.l.b16 %v1082
        %v1151 = vpack.c.b16 %v1144, %v1143
        %v1152 = vpack.c.b16 %v1146, %v1145
        %v1153 = vpack.c.b16 %v1148, %v1147
        %v1154 = vpack.c.b16 %v1150, %v1149
        %vm1155 = vcmask 523264
        %v1157 = vsel %vm1155, %v1151, 0
        %v1160 = vsel %vm1155, %v1152, 0
        %v1163 = vsel %vm1155, %v1153, 0
        %v1166 = vsel %vm1155, %v1154, 0
        %1168 = vmatprep.subr.bf16.mxu0 0
        %1169 = vmatpush1.bf16.msra.mxu0 %v1083
        %1170 = vmatprep.subr.bf16.mxu0 0
        %1171 = vmatpush1.bf16.msra.mxu0 %v1084
        %1172 = vmatprep.subr.bf16.mxu0 0
        %1173 = vmatpush1.bf16.msra.mxu0 %v1085
        %1174 = vmatprep.subr.bf16.mxu0 0
        %1175 = vmatpush1.bf16.msra.mxu0 %v1086
        %1176 = vmatprep.subr.bf16.mxu0 0
        %1177 = vmatpush1.bf16.msra.mxu0 0
        %1178 = vmatprep.subr.bf16.mxu0 0
        %1179 = vmatpush1.bf16.msra.mxu0 0
        %1180 = vmatprep.subr.bf16.mxu0 0
        %1181 = vmatpush1.bf16.msra.mxu0 0
        %1182 = vmatprep.subr.bf16.mxu0 0
        %1183 = vmatpush1.bf16.msra.mxu0 0
        %1184 = vmatprep.subr.bf16.mxu0 0
        %1185 = vmatpush1.bf16.msra.mxu0 0
        %1186 = vmatprep.subr.bf16.mxu0 0
        %1187 = vmatpush1.bf16.msra.mxu0 0
        %1188 = vmatprep.subr.bf16.mxu0 0
        %1189 = vmatpush1.bf16.msra.mxu0 0
        %1190 = vmatprep.subr.bf16.mxu0 0
        %1191 = vmatpush1.bf16.msra.mxu0 0
        %1192 = vmatprep.subr.bf16.mxu0 0
        %1193 = vmatpush1.bf16.msra.mxu0 0
        %1194 = vmatprep.subr.bf16.mxu0 0
        %1195 = vmatpush1.bf16.msra.mxu0 0
        %1196 = vmatprep.subr.bf16.mxu0 0
        %1197 = vmatpush1.bf16.msra.mxu0 0
        %1198 = vmatprep.subr.bf16.mxu0 0
        %1199 = vmatpush1.bf16.msra.mxu0 0
        %1200 = vmatprep.mubr.bf16.mxu0 0
        %1201 = vmatmul.mubr.bf16.gmra.mrb[0].mxu0 %v1157
        %v1202 = vpop.f32.mrb[0].mxu0
        %v1203 = vadd.f32 %v1098, %v1202
        %v1204 = vpop.f32.mrb[0].mxu0
        %v1205 = vpop.f32.mrb[0].mxu0
        %v1206 = vadd.f32 %v1103, %v1205
        %v1207 = vpop.f32.mrb[0].mxu0
        %1208 = vmatprep.mubr.bf16.mxu0 0
        %1209 = vmatmul.mubr.bf16.gmra.mrb[0].mxu0 %v1160
        %v1210 = vpop.f32.mrb[0].mxu0
        %v1211 = vadd.f32 %v1108, %v1210
        %v1212 = vpop.f32.mrb[0].mxu0
        %v1213 = vpop.f32.mrb[0].mxu0
        %v1214 = vadd.f32 %v1113, %v1213
        %v1215 = vpop.f32.mrb[0].mxu0
        %1216 = vmatprep.mubr.bf16.mxu0 0
        %1217 = vmatmul.mubr.bf16.gmra.mrb[0].mxu0 %v1163
        %v1218 = vpop.f32.mrb[0].mxu0
        %v1219 = vadd.f32 %v1118, %v1218
        %v1220 = vpop.f32.mrb[0].mxu0
        %v1221 = vpop.f32.mrb[0].mxu0
        %v1222 = vadd.f32 %v1123, %v1221
        %v1223 = vpop.f32.mrb[0].mxu0
        %1224 = vmatprep.mubr.bf16.mxu0 0
        %1225 = vmatmul.mubr.bf16.gmra.mrb[0].mxu0 %v1166
        %v1226 = vpop.f32.mrb[0].mxu0
        %v1227 = vadd.f32 %v1128, %v1226
        %v1228 = vpop.f32.mrb[0].mxu0
        %v1229 = vpop.f32.mrb[0].mxu0
        %v1230 = vadd.f32 %v1133, %v1229
        %v1231 = vpop.f32.mrb[0].mxu0
        %1232 = vdwg.mxu0
        %v1233 = vmul.f32 %v1203, 0.01
        %v1234 = vmul.f32 %v1206, 0.01
        %v1235 = vmul.f32 %v1211, 0.01
        %v1236 = vmul.f32 %v1214, 0.01
        %v1237 = vmul.f32 %v1219, 0.01
        %v1238 = vmul.f32 %v1222, 0.01
        %v1239 = vmul.f32 %v1227, 0.01
        %v1240 = vmul.f32 %v1230, 0.01
        %v1241 = vmax.f32 %v1203, %v1233
        %v1242 = vmax.f32 %v1206, %v1234
        %v1243 = vmax.f32 %v1211, %v1235
        %v1244 = vmax.f32 %v1214, %v1236
        %v1245 = vmax.f32 %v1219, %v1237
        %v1246 = vmax.f32 %v1222, %v1238
        %v1247 = vmax.f32 %v1227, %v1239
        %v1248 = vmax.f32 %v1230, %v1240
        %v1249 = vld [vmem:[%s7] sm:$0xf]
        %v1250 = vld [vmem:[%s7 + $0x4] sm:$0xf]
        %v1251 = vld [vmem:[%s7 + $0x8] sm:$0xf]
        %v1252 = vld [vmem:[%s7 + $0xc] sm:$0xf]
        %v1253 = vpack.c.bf16 %v1242, %v1241
        %v1254 = vpack.c.bf16 %v1244, %v1243
        %v1255 = vpack.c.bf16 %v1246, %v1245
        %v1256 = vpack.c.bf16 %v1248, %v1247
        %v1257 = vld [vmem:[%s8] sm:$0xff]
        %v1258 = vld [vmem:[%s8 + $0x8] sm:$0xff]
        %v1259 = vld [vmem:[%s8 + $0x10] sm:$0xff]
        %v1260 = vld [vmem:[%s8 + $0x18] sm:$0xff]
        %1262 = vset.pattern.permute.xlu0 0
        %1263 = vperm.xlu0 %1262, %v1257
        %v1264 = vpop.permute.xlu0 %1263
        %1267 = vset.pattern.permute.xlu0 0
        %1268 = vperm.xlu0 %1267, %v1258
        %v1269 = vpop.permute.xlu0 %1268
        %1272 = vset.pattern.permute.xlu0 0
        %1273 = vperm.xlu0 %1272, %v1259
        %v1274 = vpop.permute.xlu0 %1273
        %1277 = vset.pattern.permute.xlu0 0
        %1278 = vperm.xlu0 %1277, %v1260
        %v1279 = vpop.permute.xlu0 %1278
        %v1285 = vunpack.c.l.b16 %v1249
        %v1286 = vunpack.c.l.b16 %v1250
        %v1287 = vunpack.c.l.b16 %v1251
        %v1288 = vunpack.c.l.b16 %v1252
        %v1289 = vpack.c.b16 %v1286, %v1285
        %v1290 = vpack.c.b16 %v1288, %v1287
        %v1292 = vsel %vm1155, %v1289, 0
        %v1295 = vsel %vm1155, %v1290, 0
        %1297 = vmatprep.subr.bf16.mxu0 0
        %1298 = vmatpush1.bf16.msra.mxu0 %v1253
        %1299 = vmatprep.subr.bf16.mxu0 0
        %1300 = vmatpush1.bf16.msra.mxu0 %v1254
        %1301 = vmatprep.subr.bf16.mxu0 0
        %1302 = vmatpush1.bf16.msra.mxu0 %v1255
        %1303 = vmatprep.subr.bf16.mxu0 0
        %1304 = vmatpush1.bf16.msra.mxu0 %v1256
        %1305 = vmatprep.subr.bf16.mxu0 0
        %1306 = vmatpush1.bf16.msra.mxu0 0
        %1307 = vmatprep.subr.bf16.mxu0 0
        %1308 = vmatpush1.bf16.msra.mxu0 0
        %1309 = vmatprep.subr.bf16.mxu0 0
        %1310 = vmatpush1.bf16.msra.mxu0 0
        %1311 = vmatprep.subr.bf16.mxu0 0
        %1312 = vmatpush1.bf16.msra.mxu0 0
        %1313 = vmatprep.subr.bf16.mxu0 0
        %1314 = vmatpush1.bf16.msra.mxu0 0
        %1315 = vmatprep.subr.bf16.mxu0 0
        %1316 = vmatpush1.bf16.msra.mxu0 0
        %1317 = vmatprep.subr.bf16.mxu0 0
        %1318 = vmatpush1.bf16.msra.mxu0 0
        %1319 = vmatprep.subr.bf16.mxu0 0
        %1320 = vmatpush1.bf16.msra.mxu0 0
        %1321 = vmatprep.subr.bf16.mxu0 0
        %1322 = vmatpush1.bf16.msra.mxu0 0
        %1323 = vmatprep.subr.bf16.mxu0 0
        %1324 = vmatpush1.bf16.msra.mxu0 0
        %1325 = vmatprep.subr.bf16.mxu0 0
        %1326 = vmatpush1.bf16.msra.mxu0 0
        %1327 = vmatprep.subr.bf16.mxu0 0
        %1328 = vmatpush1.bf16.msra.mxu0 0
        %1329 = vmatprep.mubr.bf16.mxu0 0
        %1330 = vmatmul.mubr.bf16.gmra.mrb[0].mxu0 %v1292
        %v1331 = vpop.f32.mrb[0].mxu0
        %v1332 = vadd.f32 %v1264, %v1331
        %v1333 = vpop.f32.mrb[0].mxu0
        %v1334 = vpop.f32.mrb[0].mxu0
        %v1335 = vadd.f32 %v1269, %v1334
        %v1336 = vpop.f32.mrb[0].mxu0
        %1337 = vmatprep.mubr.bf16.mxu0 0
        %1338 = vmatmul.mubr.bf16.gmra.mrb[0].mxu0 %v1295
        %v1339 = vpop.f32.mrb[0].mxu0
        %v1340 = vadd.f32 %v1274, %v1339
        %v1341 = vpop.f32.mrb[0].mxu0
        %v1342 = vpop.f32.mrb[0].mxu0
        %v1343 = vadd.f32 %v1279, %v1342
        %v1344 = vpop.f32.mrb[0].mxu0
        %1345 = vdwg.mxu0
        %v1346 = vmul.f32 %v1332, 0.01
        %v1347 = vmul.f32 %v1335, 0.01
        %v1348 = vmul.f32 %v1340, 0.01
        %v1349 = vmul.f32 %v1343, 0.01
        %v1350 = vmax.f32 %v1332, %v1346
        %v1351 = vmax.f32 %v1335, %v1347
        %v1352 = vmax.f32 %v1340, %v1348
        %v1353 = vmax.f32 %v1343, %v1349
        %v1354 = vld [vmem:[%s9] sm:$0xf]
        %v1355 = vld [vmem:[%s9 + $0x4] sm:$0x3]
        %v1356 = vpack.c.bf16 %v1351, %v1350
        %v1357 = vpack.c.bf16 %v1353, %v1352
        %v1358 = vld [vmem:[%s10] sm:$0xff]
        %v1359 = vld [vmem:[%s10 + $0x8] sm:$0xf]
        %1361 = vset.pattern.permute.xlu0 0
        %1362 = vperm.xlu0 %1361, %v1358
        %v1363 = vpop.permute.xlu0 %1362
        %1366 = vset.pattern.permute.xlu0 0
        %1367 = vperm.xlu0 %1366, %v1359
        %v1368 = vpop.permute.xlu0 %1367
        %v1372 = vunpack.c.l.b16 %v1354
        %v1373 = vunpack.c.l.b16 %v1355
        %v1374 = vpack.c.b16 %v1373, %v1372
        %vm1375 = vcmask 261120
        %v1377 = vsel %vm1375, %v1374, 0
        %1379 = vmatprep.subr.bf16.mxu0 0
        %1380 = vmatpush1.bf16.msra.mxu0 %v1356
        %1381 = vmatprep.subr.bf16.mxu0 0
        %1382 = vmatpush1.bf16.msra.mxu0 %v1357
        %1383 = vmatprep.subr.bf16.mxu0 0
        %1384 = vmatpush1.bf16.msra.mxu0 0
        %1385 = vmatprep.subr.bf16.mxu0 0
        %1386 = vmatpush1.bf16.msra.mxu0 0
        %1387 = vmatprep.subr.bf16.mxu0 0
        %1388 = vmatpush1.bf16.msra.mxu0 0
        %1389 = vmatprep.subr.bf16.mxu0 0
        %1390 = vmatpush1.bf16.msra.mxu0 0
        %1391 = vmatprep.subr.bf16.mxu0 0
        %1392 = vmatpush1.bf16.msra.mxu0 0
        %1393 = vmatprep.subr.bf16.mxu0 0
        %1394 = vmatpush1.bf16.msra.mxu0 0
        %1395 = vmatprep.subr.bf16.mxu0 0
        %1396 = vmatpush1.bf16.msra.mxu0 0
        %1397 = vmatprep.subr.bf16.mxu0 0
        %1398 = vmatpush1.bf16.msra.mxu0 0
        %1399 = vmatprep.subr.bf16.mxu0 0
        %1400 = vmatpush1.bf16.msra.mxu0 0
        %1401 = vmatprep.subr.bf16.mxu0 0
        %1402 = vmatpush1.bf16.msra.mxu0 0
        %1403 = vmatprep.subr.bf16.mxu0 0
        %1404 = vmatpush1.bf16.msra.mxu0 0
        %1405 = vmatprep.subr.bf16.mxu0 0
        %1406 = vmatpush1.bf16.msra.mxu0 0
        %1407 = vmatprep.subr.bf16.mxu0 0
        %1408 = vmatpush1.bf16.msra.mxu0 0
        %1409 = vmatprep.subr.bf16.mxu0 0
        %1410 = vmatpush1.bf16.msra.mxu0 0
        %1411 = vmatprep.mubr.bf16.mxu0 0
        %1412 = vmatmul.mubr.bf16.gmra.mrb[0].mxu0 %v1377
        %v1413 = vpop.f32.mrb[0].mxu0
        %v1414 = vadd.f32 %v1363, %v1413
        %v1415 = vpop.f32.mrb[0].mxu0
        %v1416 = vpop.f32.mrb[0].mxu0
        %v1417 = vadd.f32 %v1368, %v1416
        %v1418 = vpop.f32.mrb[0].mxu0
        %1419 = vdwg.mxu0
        %v1420 = vmax.f32 %v1414, -0.5
        %v1421 = vmax.f32 %v1417, -0.5
        %v1422 = vadd.f32 %v1420, 1.0
        %v1423 = vadd.f32 %v1421, 1.0
        %v1424 = vmul.f32 %v1422, %v562
        %v1425 = vmul.f32 %v1423, %v562
        %v1426 = vsub.f32 %v1424, 1.0
        %v1427 = vsub.f32 %v1425, 1.0
        %1428 = vst [vmem:[%s469] sm:$0xff] %v1426
        %1429 = vst [vmem:[%s469 + $0x8] sm:$0xf] %v1427
        %s1430 = sand.u32 %s266, 1
        %s1431 = sand.u32 %s266, 1
        %s1432 = smul.addr %s1431, 16
        %s1433 = scalar_lea.vmem [#allocation3], %s1432
        // Predicated region
        $region106: #{bayer_nn_forward.1} parent=100 // pred_check
          %p1434 = pneg %p276
        $region107: #{bayer_nn_forward.1} parent=100 // pred_check_branch
          %1436 = sbr.rel (%p1434) target = $region109
        $region108: #{bayer_nn_forward.1} parent=100 // pred_region
          %s1437 = smul.addr %s22, 8
          %s1438 = scalar_lea.vmem %s11, %s1437
          // Predicated region
          $region110: #{bayer_nn_forward.1} parent=108 // pred_check
            _
          $region111: #{bayer_nn_forward.1} parent=108 // pred_check_branch
            %1440 = sbr.rel (0) target = $region113
          $region112: #{bayer_nn_forward.1} parent=108 // pred_region
            // Predicated region
            $region114: #{bayer_nn_forward.1} parent=112 // pred_check
              _
            $region115: #{bayer_nn_forward.1} parent=112 // pred_check_branch
              %1442 = sbr.rel (0) target = $region117
            $region116: #{bayer_nn_forward.1} parent=112 // pred_region
              // Predicated region
              $region129: #{bayer_nn_forward.1} parent=116 // pred_check
                _
              $region130: #{bayer_nn_forward.1} parent=116 // pred_check_branch
                %1459 = sbr.rel (0) target = $region132
              $region131: #{bayer_nn_forward.1} parent=116 // pred_region
                loop: start=0, step=1, limit=1
                $region133: #{bayer_nn_forward.1} parent=131 // loop_pre_header
                  _
                $region134: #{bayer_nn_forward.1} parent=131 // loop_header
                  %s1461 = sphi 0, %s1465
                  %p1462 = scmp.ge.s32.totalorder %s1461, 1
                  %s1466 = sphi %s1433, %s1433
                  %s1467 = sphi %s1438, %s1438
                $region135: #{bayer_nn_forward.1} parent=131 // loop_header_branch
                  %1464 = sbr.rel (%p1462) target = $region139
                $region136: #{bayer_nn_forward.1} parent=131 // loop_body
                  %v1468 = vld [vmem:[%s1466] sm:$0xff]
                  %1469 = vst [vmem:[%s1467] sm:$0xff] %v1468
                  %v1470 = vld [vmem:[%s1466 + $0x8] sm:$0xff]
                  %1471 = vst [vmem:[%s1467 + $0x18] sm:$0xff] %v1470
                $region137: #{bayer_nn_forward.1} parent=131 // loop_footer
                  %s1465 = sadd.s32 1, %s1461
                $region138: #{bayer_nn_forward.1} parent=131 // loop_footer_branch
                  %1460 = sbr.rel target = $region134
                $region139: #{bayer_nn_forward.1} parent=131 // loop_exit
                  _
              $region132: #{bayer_nn_forward.1} parent=116 // pred_fallthru
                _
              // Predicated region
              $region140: #{bayer_nn_forward.1} parent=116 // pred_check
                _
              $region141: #{bayer_nn_forward.1} parent=116 // pred_check_branch
                %1473 = sbr.rel target = $region143
              $region142: #{bayer_nn_forward.1} parent=116 // pred_region
                _
              $region143: #{bayer_nn_forward.1} parent=116 // pred_fallthru
                _
            $region117: #{bayer_nn_forward.1} parent=112 // pred_fallthru
              _
            // Predicated region
            $region118: #{bayer_nn_forward.1} parent=112 // pred_check
              _
            $region119: #{bayer_nn_forward.1} parent=112 // pred_check_branch
              %1444 = sbr.rel target = $region121
            $region120: #{bayer_nn_forward.1} parent=112 // pred_region
              loop: start=0, step=1, limit=1
              $region122: #{bayer_nn_forward.1} parent=120 // loop_pre_header
                _
              $region123: #{bayer_nn_forward.1} parent=120 // loop_header
                %s1447 = sphi 0, %s1451
                %p1448 = scmp.ge.s32.totalorder %s1447, 1
                %s1452 = sphi %s1433, %s1433
                %s1453 = sphi %s1438, %s1438
              $region124: #{bayer_nn_forward.1} parent=120 // loop_header_branch
                %1450 = sbr.rel (%p1448) target = $region128
              $region125: #{bayer_nn_forward.1} parent=120 // loop_body
                %v1454 = vld [vmem:[%s1452] sm:$0xff]
                %1455 = vst [vmem:[%s1453] sm:$0xff] %v1454
                %v1456 = vld [vmem:[%s1452 + $0x8] sm:$0xff]
                %1457 = vst [vmem:[%s1453 + $0x18] sm:$0xff] %v1456
              $region126: #{bayer_nn_forward.1} parent=120 // loop_footer
                %s1451 = sadd.s32 1, %s1447
              $region127: #{bayer_nn_forward.1} parent=120 // loop_footer_branch
                %1446 = sbr.rel target = $region123
              $region128: #{bayer_nn_forward.1} parent=120 // loop_exit
                _
            $region121: #{bayer_nn_forward.1} parent=112 // pred_fallthru
              _
          $region113: #{bayer_nn_forward.1} parent=108 // pred_fallthru
            _
          %1474 = vnop
        $region109: #{bayer_nn_forward.1} parent=100 // pred_fallthru
          _
      $region101: #{bayer_nn_forward.1} parent=5 // pred_fallthru
        _
      %p1475 = scmp.le.s32.totalorder 2, %s17
      // Predicated region
      $region144: #{bayer_nn_forward.1} parent=5 // pred_check
        %p1476 = pneg %p1475
      $region145: #{bayer_nn_forward.1} parent=5 // pred_check_branch
        %1478 = sbr.rel (%p1476) target = $region147
      $region146: #{bayer_nn_forward.1} parent=5 // pred_region
        %s1479 = ssub.s32 %s17, 2
        // Predicated region
        $region148: #{bayer_nn_forward.1} parent=146 // pred_check
          %p1480 = pneg %p282
        $region149: #{bayer_nn_forward.1} parent=146 // pred_check_branch
          %1482 = sbr.rel (%p1480) target = $region151
        $region150: #{bayer_nn_forward.1} parent=146 // pred_region
          %s1483 = sand.u32 %s267, 1
          %s1484 = sand.u32 %s267, 1
          %s1485 = smul.addr %s1484, 16
          %s1486 = scalar_lea.vmem [#allocation3], %s1485
        $region151: #{bayer_nn_forward.1} parent=146 // pred_fallthru
          _
      $region147: #{bayer_nn_forward.1} parent=5 // pred_fallthru
        _
    $region6: #{bayer_nn_forward.1} parent=1 // loop_footer
      %s21 = sadd.s32 1, %s17
    $region7: #{bayer_nn_forward.1} parent=1 // loop_footer_branch
      %16 = sbr.rel target = $region3
    $region8: #{bayer_nn_forward.1} parent=1 // loop_exit
      _

</llo_original>
